<compile_context>
chip_gen: v7x
topology: tpu7x:2x2x1
jax: 0.10.0
libtpu: 0.0.40
codegen_flags: <defaults>
</compile_context>

<pallas_src>
import functools

import jax
import jax.numpy as jnp
from jax.experimental import pallas as pl
from jax.experimental.pallas import tpu as pltpu


def _largest_divisor_leq(n: int, cap: int) -> int:
    cap = max(1, min(n, cap))
    for d in range(cap, 0, -1):
        if n % d == 0:
            return d
    return 1


def _build_banded_weights(weight, C, H, k, p):
    """Banded matrices A of shape (k, H, 2H) such that

        out[h, w] = sum_kw ( A[kw] @ rolled_planes_kw )[h, w]

    where rolled_planes_kw is the lane-rolled stack [channel_sum; channel_max]
    of shape (2H, Wpad) and A[kw, h, c*H + r] = weight[0, c, r - h + p, kw]
    inside the band (0 outside).  The avg rows (c == 0) are pre-scaled by 1/C
    so the kernel can accumulate a plain channel sum.
    """
    w_ck = weight[0].astype(jnp.float32)                  # (2, k, k)  [c, kh, kw]
    h_idx = jnp.arange(H)[:, None]                        # (H, 1)
    r_idx = jnp.arange(H)[None, :]                        # (1, H)
    kh = r_idx - h_idx + p                                # (H, H)
    valid = (kh >= 0) & (kh < k)
    kh_cl = jnp.clip(kh, 0, k - 1)
    g = w_ck[:, kh_cl, :]                                 # (2, H, H, k)  [c, h, r, kw]
    g = jnp.where(valid[None, :, :, None], g, 0.0)
    scale = jnp.array([1.0 / C, 1.0], jnp.float32)        # fold mean's 1/C into avg taps
    g = g * scale[:, None, None, None]
    return jnp.transpose(g, (3, 1, 0, 2)).reshape(k, H, 2 * H)


def _spatial_attention_kernel(a_ref, x_ref, o_ref,
                              sum_ref, max_ref, plane_ref, *, tci):
    """a_ref:     VMEM f32 (k, H, 2H)         banded conv weights
       x_ref:     VMEM     (nb, Tc, H, W)     input channel chunk
       o_ref:     VMEM     (nb, 1, H, W)      output attention map
       sum_ref:   VMEM f32 (nb, H, W)         running channel sum   (scratch)
       max_ref:   VMEM f32 (nb, H, W)         running channel max   (scratch)
       plane_ref: VMEM f32 (nb, 2H, Wpad)     lane-aligned conv planes (scratch)
    """
    nb, Tc, H, W = x_ref.shape
    k = a_ref.shape[0]
    p = (k - 1) // 2
    Wpad = plane_ref.shape[-1]
    c = pl.program_id(1)
    nc = pl.num_programs(1)

    # ---- fused channel sum + max over this Tc chunk (single pass, sub-chunked
    #      so at most (nb, tci, H, W) is live in vregs) -------------------------
    n_inner = Tc // tci
    if n_inner == 1:
        xc = x_ref[...].astype(jnp.float32)
        s = jnp.sum(xc, axis=1)
        m = jnp.max(xc, axis=1)
    else:
        def red_body(i, carry):
            s_acc, m_acc = carry
            off = pl.multiple_of(i * tci, tci)
            xci = x_ref[:, pl.ds(off, tci), :, :].astype(jnp.float32)
            return (s_acc + jnp.sum(xci, axis=1),
                    jnp.maximum(m_acc, jnp.max(xci, axis=1)))

        s, m = jax.lax.fori_loop(
            0, n_inner, red_body,
            (jnp.zeros((nb, H, W), jnp.float32),
             jnp.full((nb, H, W), -jnp.inf, jnp.float32)),
            unroll=(n_inner <= 8))

    @pl.when(c == 0)
    def _():
        sum_ref[...] = s
        max_ref[...] = m

    @pl.when(c > 0)
    def _():
        sum_ref[...] = sum_ref[...] + s
        max_ref[...] = jnp.maximum(max_ref[...], m)

    # ---- last channel chunk: 7x7 depth-2 conv + sigmoid ----------------------
    @pl.when(c == nc - 1)
    def _():
        # Stage lane-aligned planes: rows [0,H) = channel sum, rows [H,2H) =
        # channel max; columns [W, Wpad) stay zero so they provide the conv's
        # horizontal zero padding and absorb the roll wrap-around.
        plane_ref[...] = jnp.zeros_like(plane_ref)
        plane_ref[:, pl.ds(0, H), pl.ds(0, W)] = sum_ref[...]
        plane_ref[:, pl.ds(H, H), pl.ds(0, W)] = max_ref[...]

        for n in range(nb):
            pln = plane_ref[n]                          # (2H, Wpad) f32
            acc = jnp.zeros((H, Wpad), jnp.float32)
            for kw in range(k):
                shift = (p - kw) % Wpad                 # static, non-negative
                rolled = pln if shift == 0 else pltpu.roll(pln, shift, axis=1)
                # One small MXU matmul folds the kh taps, channel mix and 1/C.
                acc = acc + jnp.dot(a_ref[kw], rolled,
                                    preferred_element_type=jnp.float32)
            y = jax.nn.sigmoid(acc)                     # (H, Wpad) f32
            o_ref[n, 0, :, :] = y[:, 0:W].astype(o_ref.dtype)


def spatial_attention(x, weight, kernel_size: int = 7, *,
                      max_block_channels=None):
    """x: (N, C, H, W);  weight: (1, 2, k, k) (PyTorch OIHW)  ->  (N, 1, H, W)."""
    assert kernel_size in (3, 7), "kernel size must be 3 or 7"
    N, C, H, W = x.shape
    k = kernel_size
    p = (k - 1) // 2
    Wpad = ((W + p + 127) // 128) * 128                 # lane-aligned plane width

    A = _build_banded_weights(weight, C, H, k, p)       # (k, H, 2H) f32

    itemsize = jnp.dtype(x.dtype).itemsize
    nb = _largest_divisor_leq(N, 8)                     # a few batch elems per step
    # Keep the double-buffered x block around ~4 MiB -> fits v5e's 16 MiB
    # default scoped VMEM (and far under v6e / v7x defaults).
    tc_cap = max(1, (2 * 1024 * 1024) // max(1, nb * H * W * itemsize))
    if max_block_channels is not None:
        tc_cap = min(tc_cap, int(max_block_channels))
    Tc = _largest_divisor_leq(C, tc_cap)
    # In-kernel sub-chunk: at most ~32 KiB of x live in vregs at a time.
    tci = _largest_divisor_leq(Tc, max(1, (32 * 1024) // max(1, nb * H * W * 4)))
    # TODO(synk): ragged N / C tails fall back to divisor-1 blocks (correct, slower).

    kernel = functools.partial(_spatial_attention_kernel, tci=tci)

    return pl.pallas_call(
        kernel,
        out_shape=jax.ShapeDtypeStruct((N, 1, H, W), x.dtype),
        grid_spec=pltpu.PrefetchScalarGridSpec(
            num_scalar_prefetch=0,
            grid=(N // nb, C // Tc),
            in_specs=[
                pl.BlockSpec((k, H, 2 * H), lambda n, c: (0, 0, 0)),       # banded weights
                pl.BlockSpec((nb, Tc, H, W), lambda n, c: (n, c, 0, 0)),   # x channel chunk
            ],
            out_specs=pl.BlockSpec((nb, 1, H, W), lambda n, c: (n, 0, 0, 0)),
            scratch_shapes=[
                pltpu.VMEM((nb, H, W), jnp.float32),         # running channel sum
                pltpu.VMEM((nb, H, W), jnp.float32),         # running channel max
                pltpu.VMEM((nb, 2 * H, Wpad), jnp.float32),  # padded conv planes
            ]),
        compiler_params=pltpu.CompilerParams(
            dimension_semantics=("parallel", "arbitrary")),
    )(A, x)


def _reference(x, weight, kernel_size=7):
    pad = (kernel_size - 1) // 2
    avg = jnp.mean(x, axis=1, keepdims=True)
    mx = jnp.max(x, axis=1, keepdims=True)
    cat = jnp.concatenate([avg, mx], axis=1)
    y = jax.lax.conv_general_dilated(
        cat, weight.astype(cat.dtype), window_strides=(1, 1),
        padding=[(pad, pad), (pad, pad)],
        dimension_numbers=("NCHW", "OIHW", "NCHW"))
    return jax.nn.sigmoid(y)


def _run_case(key, shape, kernel_size, **kwargs):
    kx, kw_key = jax.random.split(key)
    N, C, H, W = shape
    x = jax.random.normal(kx, shape, dtype=jnp.float32)
    fan_in = 2 * kernel_size * kernel_size
    bound = 1.0 / (fan_in ** 0.5)
    weight = jax.random.uniform(kw_key, (1, 2, kernel_size, kernel_size),
                                dtype=jnp.float32, minval=-bound, maxval=bound)

    out = jax.block_until_ready(spatial_attention(x, weight, kernel_size, **kwargs))
    ref = jax.block_until_ready(_reference(x, weight, kernel_size))

    assert out.shape == (N, 1, H, W)
    err = float(jnp.max(jnp.abs(out - ref)))
    assert jnp.allclose(out, ref, atol=2e-5, rtol=2e-5), (
        f"mismatch vs reference for shape {shape}: max abs err {err}")


if __name__ == "__main__":
    key = jax.random.PRNGKey(0)
    k1, k2 = jax.random.split(key)

    # Spec shape: batch=2, channels=4, spatial=16x16, 7x7 conv.
    _run_case(k1, (2, 4, 16, 16), kernel_size=7)
    # Larger / unaligned case: exercises channel-chunk accumulation across the
    # grid, the in-kernel fori_loop reduction, and non-(8,128)-aligned H, W.
    _run_case(k2, (3, 96, 20, 40), kernel_size=7, max_block_channels=32)

    print("KERNEL_OK")
</pallas_src>

<mosaic_0001>
module attributes {stable_mosaic.version = 11 : i64} {
  func.func @_spatial_attention_kernel(%arg0: i32, %arg1: i32, %arg2: memref<7x16x32xf32, #tpu.memory_space<vmem>>, %arg3: memref<2x4x16x16xf32, #tpu.memory_space<vmem>>, %arg4: memref<2x1x16x16xf32, #tpu.memory_space<vmem>>, %arg5: memref<2x16x16xf32, #tpu.memory_space<vmem>>, %arg6: memref<2x16x16xf32, #tpu.memory_space<vmem>>, %arg7: memref<2x32x128xf32, #tpu.memory_space<vmem>>) attributes {dimension_semantics = [#tpu.dimension_semantics<parallel>, #tpu.dimension_semantics<arbitrary>], iteration_bounds = array<i64: 1, 1>, scalar_prefetch = 0 : i64, scratch_operands = 3 : i64, tpu.core_type = #tpu.core_type<tc>, window_params = [{pipeline_mode = #tpu.pipeline_mode<synchronous>, transform_indices = @transform_0, window_bounds = array<i64: 7, 16, 32>}, {transform_indices = @transform_1, window_bounds = array<i64: 2, 4, 16, 16>}, {transform_indices = @transform_2, window_bounds = array<i64: 2, 1, 16, 16>}]} {
    %c0 = arith.constant 0 : index
    %c0_0 = arith.constant 0 : index
    %c0_1 = arith.constant 0 : index
    %c0_2 = arith.constant 0 : index
    %0 = vector.load %arg3[%c0, %c0_0, %c0_1, %c0_2] : memref<2x4x16x16xf32, #tpu.memory_space<vmem>>, vector<2x4x16x16xf32>
    %cst = arith.constant dense<0.000000e+00> : vector<2x16x16xf32>
    %1 = vector.multi_reduction <add>, %0, %cst [1] : vector<2x4x16x16xf32> to vector<2x16x16xf32>
    %cst_3 = arith.constant dense<0xFF800000> : vector<2x16x16xf32>
    %2 = vector.multi_reduction <maximumf>, %0, %cst_3 [1] : vector<2x4x16x16xf32> to vector<2x16x16xf32>
    %c0_i32 = arith.constant 0 : i32
    %3 = arith.cmpi eq, %arg1, %c0_i32 : i32
    %4 = arith.extui %3 : i1 to i32
    %c0_i32_4 = arith.constant 0 : i32
    %5 = arith.cmpi ne, %4, %c0_i32_4 : i32
    scf.if %5 {
      %c0_9 = arith.constant 0 : index
      %c0_10 = arith.constant 0 : index
      %c0_11 = arith.constant 0 : index
      %12 = vector.load %arg5[%c0_9, %c0_10, %c0_11] : memref<2x16x16xf32, #tpu.memory_space<vmem>>, vector<2x16x16xf32>
      tpu.vector_store %arg5[%c0_9, %c0_10, %c0_11], %1 {strides = array<i32>} : memref<2x16x16xf32, #tpu.memory_space<vmem>>, vector<2x16x16xf32>,
      %c0_12 = arith.constant 0 : index
      %c0_13 = arith.constant 0 : index
      %c0_14 = arith.constant 0 : index
      %13 = vector.load %arg6[%c0_12, %c0_13, %c0_14] : memref<2x16x16xf32, #tpu.memory_space<vmem>>, vector<2x16x16xf32>
      tpu.vector_store %arg6[%c0_12, %c0_13, %c0_14], %2 {strides = array<i32>} : memref<2x16x16xf32, #tpu.memory_space<vmem>>, vector<2x16x16xf32>,
    } else {
    }
    %c0_i32_5 = arith.constant 0 : i32
    %6 = arith.cmpi sgt, %arg1, %c0_i32_5 : i32
    %7 = arith.extui %6 : i1 to i32
    %c0_i32_6 = arith.constant 0 : i32
    %8 = arith.cmpi ne, %7, %c0_i32_6 : i32
    scf.if %8 {
      %c0_9 = arith.constant 0 : index
      %c0_10 = arith.constant 0 : index
      %c0_11 = arith.constant 0 : index
      %12 = vector.load %arg5[%c0_9, %c0_10, %c0_11] : memref<2x16x16xf32, #tpu.memory_space<vmem>>, vector<2x16x16xf32>
      %13 = arith.addf %12, %1 : vector<2x16x16xf32>
      %c0_12 = arith.constant 0 : index
      %c0_13 = arith.constant 0 : index
      %c0_14 = arith.constant 0 : index
      %14 = vector.load %arg5[%c0_12, %c0_13, %c0_14] : memref<2x16x16xf32, #tpu.memory_space<vmem>>, vector<2x16x16xf32>
      tpu.vector_store %arg5[%c0_12, %c0_13, %c0_14], %13 {strides = array<i32>} : memref<2x16x16xf32, #tpu.memory_space<vmem>>, vector<2x16x16xf32>,
      %c0_15 = arith.constant 0 : index
      %c0_16 = arith.constant 0 : index
      %c0_17 = arith.constant 0 : index
      %15 = vector.load %arg6[%c0_15, %c0_16, %c0_17] : memref<2x16x16xf32, #tpu.memory_space<vmem>>, vector<2x16x16xf32>
      %16 = arith.maximumf %15, %2 : vector<2x16x16xf32>
      %c0_18 = arith.constant 0 : index
      %c0_19 = arith.constant 0 : index
      %c0_20 = arith.constant 0 : index
      %17 = vector.load %arg6[%c0_18, %c0_19, %c0_20] : memref<2x16x16xf32, #tpu.memory_space<vmem>>, vector<2x16x16xf32>
      tpu.vector_store %arg6[%c0_18, %c0_19, %c0_20], %16 {strides = array<i32>} : memref<2x16x16xf32, #tpu.memory_space<vmem>>, vector<2x16x16xf32>,
    } else {
    }
    %c0_i32_7 = arith.constant 0 : i32
    %9 = arith.cmpi eq, %arg1, %c0_i32_7 : i32
    %10 = arith.extui %9 : i1 to i32
    %c0_i32_8 = arith.constant 0 : i32
    %11 = arith.cmpi ne, %10, %c0_i32_8 : i32
    scf.if %11 {
      %cst_9 = arith.constant 0.000000e+00 : f32
      %12 = vector.broadcast %cst_9 : f32 to vector<2x32x128xf32>
      %c0_10 = arith.constant 0 : index
      %c0_11 = arith.constant 0 : index
      %c0_12 = arith.constant 0 : index
      %13 = vector.load %arg7[%c0_10, %c0_11, %c0_12] : memref<2x32x128xf32, #tpu.memory_space<vmem>>, vector<2x32x128xf32>
      tpu.vector_store %arg7[%c0_10, %c0_11, %c0_12], %12 {strides = array<i32>} : memref<2x32x128xf32, #tpu.memory_space<vmem>>, vector<2x32x128xf32>,
      %c0_13 = arith.constant 0 : index
      %c0_14 = arith.constant 0 : index
      %c0_15 = arith.constant 0 : index
      %14 = vector.load %arg5[%c0_13, %c0_14, %c0_15] : memref<2x16x16xf32, #tpu.memory_space<vmem>>, vector<2x16x16xf32>
      %c0_16 = arith.constant 0 : index
      %c0_17 = arith.constant 0 : index
      %c0_18 = arith.constant 0 : index
      %15 = vector.load %arg7[%c0_16, %c0_17, %c0_18] : memref<2x32x128xf32, #tpu.memory_space<vmem>>, vector<2x16x16xf32>
      tpu.vector_store %arg7[%c0_16, %c0_17, %c0_18], %14 {strides = array<i32>} : memref<2x32x128xf32, #tpu.memory_space<vmem>>, vector<2x16x16xf32>,
      %c0_19 = arith.constant 0 : index
      %c0_20 = arith.constant 0 : index
      %c0_21 = arith.constant 0 : index
      %16 = vector.load %arg6[%c0_19, %c0_20, %c0_21] : memref<2x16x16xf32, #tpu.memory_space<vmem>>, vector<2x16x16xf32>
      %c0_22 = arith.constant 0 : index
      %c16 = arith.constant 16 : index
      %c0_23 = arith.constant 0 : index
      %17 = vector.load %arg7[%c0_22, %c16, %c0_23] : memref<2x32x128xf32, #tpu.memory_space<vmem>>, vector<2x16x16xf32>
      tpu.vector_store %arg7[%c0_22, %c16, %c0_23], %16 {strides = array<i32>} : memref<2x32x128xf32, #tpu.memory_space<vmem>>, vector<2x16x16xf32>,
      %c0_24 = arith.constant 0 : index
      %c0_25 = arith.constant 0 : index
      %c0_26 = arith.constant 0 : index
      %18 = vector.load %arg7[%c0_24, %c0_25, %c0_26] : memref<2x32x128xf32, #tpu.memory_space<vmem>>, vector<1x32x128xf32>
      %19 = vector.shape_cast %18 : vector<1x32x128xf32> to vector<32x128xf32>
      %cst_27 = arith.constant 0.000000e+00 : f32
      %20 = vector.broadcast %cst_27 : f32 to vector<16x128xf32>
      %c3_i32 = arith.constant 3 : i32
      %21 = tpu.dynamic_rotate %19 by %c3_i32 dim 1 : vector<32x128xf32>, i32 -> vector<32x128xf32>
      %c0_28 = arith.constant 0 : index
      %c0_29 = arith.constant 0 : index
      %c0_30 = arith.constant 0 : index
      %22 = vector.load %arg2[%c0_28, %c0_29, %c0_30] : memref<7x16x32xf32, #tpu.memory_space<vmem>>, vector<1x16x32xf32>
      %23 = vector.shape_cast %22 : vector<1x16x32xf32> to vector<16x32xf32>
      %cst_31 = arith.constant dense<0.000000e+00> : vector<16x128xf32>
      %24 = tpu.matmul %23, %21, %cst_31 {dimension_numbers = #tpu.dot_dimension_numbers<[1], [0], [0], [1], [0, 0, 1, 1], [], []>} : vector<16x32xf32>, vector<32x128xf32>, vector<16x128xf32> -> vector<16x128xf32>
      %25 = arith.addf %20, %24 : vector<16x128xf32>
      %c2_i32 = arith.constant 2 : i32
      %26 = tpu.dynamic_rotate %19 by %c2_i32 dim 1 : vector<32x128xf32>, i32 -> vector<32x128xf32>
      %c1 = arith.constant 1 : index
      %c0_32 = arith.constant 0 : index
      %c0_33 = arith.constant 0 : index
      %27 = vector.load %arg2[%c1, %c0_32, %c0_33] : memref<7x16x32xf32, #tpu.memory_space<vmem>>, vector<1x16x32xf32>
      %28 = vector.shape_cast %27 : vector<1x16x32xf32> to vector<16x32xf32>
      %cst_34 = arith.constant dense<0.000000e+00> : vector<16x128xf32>
      %29 = tpu.matmul %28, %26, %cst_34 {dimension_numbers = #tpu.dot_dimension_numbers<[1], [0], [0], [1], [0, 0, 1, 1], [], []>} : vector<16x32xf32>, vector<32x128xf32>, vector<16x128xf32> -> vector<16x128xf32>
      %30 = arith.addf %25, %29 : vector<16x128xf32>
      %c1_i32 = arith.constant 1 : i32
      %31 = tpu.dynamic_rotate %19 by %c1_i32 dim 1 : vector<32x128xf32>, i32 -> vector<32x128xf32>
      %c2 = arith.constant 2 : index
      %c0_35 = arith.constant 0 : index
      %c0_36 = arith.constant 0 : index
      %32 = vector.load %arg2[%c2, %c0_35, %c0_36] : memref<7x16x32xf32, #tpu.memory_space<vmem>>, vector<1x16x32xf32>
      %33 = vector.shape_cast %32 : vector<1x16x32xf32> to vector<16x32xf32>
      %cst_37 = arith.constant dense<0.000000e+00> : vector<16x128xf32>
      %34 = tpu.matmul %33, %31, %cst_37 {dimension_numbers = #tpu.dot_dimension_numbers<[1], [0], [0], [1], [0, 0, 1, 1], [], []>} : vector<16x32xf32>, vector<32x128xf32>, vector<16x128xf32> -> vector<16x128xf32>
      %35 = arith.addf %30, %34 : vector<16x128xf32>
      %c3 = arith.constant 3 : index
      %c0_38 = arith.constant 0 : index
      %c0_39 = arith.constant 0 : index
      %36 = vector.load %arg2[%c3, %c0_38, %c0_39] : memref<7x16x32xf32, #tpu.memory_space<vmem>>, vector<1x16x32xf32>
      %37 = vector.shape_cast %36 : vector<1x16x32xf32> to vector<16x32xf32>
      %cst_40 = arith.constant dense<0.000000e+00> : vector<16x128xf32>
      %38 = tpu.matmul %37, %19, %cst_40 {dimension_numbers = #tpu.dot_dimension_numbers<[1], [0], [0], [1], [0, 0, 1, 1], [], []>} : vector<16x32xf32>, vector<32x128xf32>, vector<16x128xf32> -> vector<16x128xf32>
      %39 = arith.addf %35, %38 : vector<16x128xf32>
      %c127_i32 = arith.constant 127 : i32
      %40 = tpu.dynamic_rotate %19 by %c127_i32 dim 1 : vector<32x128xf32>, i32 -> vector<32x128xf32>
      %c4 = arith.constant 4 : index
      %c0_41 = arith.constant 0 : index
      %c0_42 = arith.constant 0 : index
      %41 = vector.load %arg2[%c4, %c0_41, %c0_42] : memref<7x16x32xf32, #tpu.memory_space<vmem>>, vector<1x16x32xf32>
      %42 = vector.shape_cast %41 : vector<1x16x32xf32> to vector<16x32xf32>
      %cst_43 = arith.constant dense<0.000000e+00> : vector<16x128xf32>
      %43 = tpu.matmul %42, %40, %cst_43 {dimension_numbers = #tpu.dot_dimension_numbers<[1], [0], [0], [1], [0, 0, 1, 1], [], []>} : vector<16x32xf32>, vector<32x128xf32>, vector<16x128xf32> -> vector<16x128xf32>
      %44 = arith.addf %39, %43 : vector<16x128xf32>
      %c126_i32 = arith.constant 126 : i32
      %45 = tpu.dynamic_rotate %19 by %c126_i32 dim 1 : vector<32x128xf32>, i32 -> vector<32x128xf32>
      %c5 = arith.constant 5 : index
      %c0_44 = arith.constant 0 : index
      %c0_45 = arith.constant 0 : index
      %46 = vector.load %arg2[%c5, %c0_44, %c0_45] : memref<7x16x32xf32, #tpu.memory_space<vmem>>, vector<1x16x32xf32>
      %47 = vector.shape_cast %46 : vector<1x16x32xf32> to vector<16x32xf32>
      %cst_46 = arith.constant dense<0.000000e+00> : vector<16x128xf32>
      %48 = tpu.matmul %47, %45, %cst_46 {dimension_numbers = #tpu.dot_dimension_numbers<[1], [0], [0], [1], [0, 0, 1, 1], [], []>} : vector<16x32xf32>, vector<32x128xf32>, vector<16x128xf32> -> vector<16x128xf32>
      %49 = arith.addf %44, %48 : vector<16x128xf32>
      %c125_i32 = arith.constant 125 : i32
      %50 = tpu.dynamic_rotate %19 by %c125_i32 dim 1 : vector<32x128xf32>, i32 -> vector<32x128xf32>
      %c6 = arith.constant 6 : index
      %c0_47 = arith.constant 0 : index
      %c0_48 = arith.constant 0 : index
      %51 = vector.load %arg2[%c6, %c0_47, %c0_48] : memref<7x16x32xf32, #tpu.memory_space<vmem>>, vector<1x16x32xf32>
      %52 = vector.shape_cast %51 : vector<1x16x32xf32> to vector<16x32xf32>
      %cst_49 = arith.constant dense<0.000000e+00> : vector<16x128xf32>
      %53 = tpu.matmul %52, %50, %cst_49 {dimension_numbers = #tpu.dot_dimension_numbers<[1], [0], [0], [1], [0, 0, 1, 1], [], []>} : vector<16x32xf32>, vector<32x128xf32>, vector<16x128xf32> -> vector<16x128xf32>
      %54 = arith.addf %49, %53 : vector<16x128xf32>
      %55 = arith.negf %54 : vector<16x128xf32>
      %56 = math.exp %55 : vector<16x128xf32>
      %cst_50 = arith.constant 1.000000e+00 : f32
      %57 = vector.broadcast %cst_50 : f32 to vector<16x128xf32>
      %58 = arith.addf %57, %56 : vector<16x128xf32>
      %59 = arith.divf %57, %58 : vector<16x128xf32>
      %60 = vector.extract_strided_slice %59 {offsets = [0, 0], sizes = [16, 16], strides = [1, 1]} : vector<16x128xf32> to vector<16x16xf32>
      %c0_51 = arith.constant 0 : index
      %c0_52 = arith.constant 0 : index
      %c0_53 = arith.constant 0 : index
      %c0_54 = arith.constant 0 : index
      %61 = vector.load %arg4[%c0_51, %c0_52, %c0_53, %c0_54] : memref<2x1x16x16xf32, #tpu.memory_space<vmem>>, vector<1x1x16x16xf32>
      %62 = vector.shape_cast %61 : vector<1x1x16x16xf32> to vector<16x16xf32>
      %63 = vector.shape_cast %60 : vector<16x16xf32> to vector<1x1x16x16xf32>
      tpu.vector_store %arg4[%c0_51, %c0_52, %c0_53, %c0_54], %63 {strides = array<i32>} : memref<2x1x16x16xf32, #tpu.memory_space<vmem>>, vector<1x1x16x16xf32>,
      %c1_55 = arith.constant 1 : index
      %c0_56 = arith.constant 0 : index
      %c0_57 = arith.constant 0 : index
      %64 = vector.load %arg7[%c1_55, %c0_56, %c0_57] : memref<2x32x128xf32, #tpu.memory_space<vmem>>, vector<1x32x128xf32>
      %65 = vector.shape_cast %64 : vector<1x32x128xf32> to vector<32x128xf32>
      %cst_58 = arith.constant 0.000000e+00 : f32
      %66 = vector.broadcast %cst_58 : f32 to vector<16x128xf32>
      %c3_i32_59 = arith.constant 3 : i32
      %67 = tpu.dynamic_rotate %65 by %c3_i32_59 dim 1 : vector<32x128xf32>, i32 -> vector<32x128xf32>
      %c0_60 = arith.constant 0 : index
      %c0_61 = arith.constant 0 : index
      %c0_62 = arith.constant 0 : index
      %68 = vector.load %arg2[%c0_60, %c0_61, %c0_62] : memref<7x16x32xf32, #tpu.memory_space<vmem>>, vector<1x16x32xf32>
      %69 = vector.shape_cast %68 : vector<1x16x32xf32> to vector<16x32xf32>
      %cst_63 = arith.constant dense<0.000000e+00> : vector<16x128xf32>
      %70 = tpu.matmul %69, %67, %cst_63 {dimension_numbers = #tpu.dot_dimension_numbers<[1], [0], [0], [1], [0, 0, 1, 1], [], []>} : vector<16x32xf32>, vector<32x128xf32>, vector<16x128xf32> -> vector<16x128xf32>
      %71 = arith.addf %66, %70 : vector<16x128xf32>
      %c2_i32_64 = arith.constant 2 : i32
      %72 = tpu.dynamic_rotate %65 by %c2_i32_64 dim 1 : vector<32x128xf32>, i32 -> vector<32x128xf32>
      %c1_65 = arith.constant 1 : index
      %c0_66 = arith.constant 0 : index
      %c0_67 = arith.constant 0 : index
      %73 = vector.load %arg2[%c1_65, %c0_66, %c0_67] : memref<7x16x32xf32, #tpu.memory_space<vmem>>, vector<1x16x32xf32>
      %74 = vector.shape_cast %73 : vector<1x16x32xf32> to vector<16x32xf32>
      %cst_68 = arith.constant dense<0.000000e+00> : vector<16x128xf32>
      %75 = tpu.matmul %74, %72, %cst_68 {dimension_numbers = #tpu.dot_dimension_numbers<[1], [0], [0], [1], [0, 0, 1, 1], [], []>} : vector<16x32xf32>, vector<32x128xf32>, vector<16x128xf32> -> vector<16x128xf32>
      %76 = arith.addf %71, %75 : vector<16x128xf32>
      %c1_i32_69 = arith.constant 1 : i32
      %77 = tpu.dynamic_rotate %65 by %c1_i32_69 dim 1 : vector<32x128xf32>, i32 -> vector<32x128xf32>
      %c2_70 = arith.constant 2 : index
      %c0_71 = arith.constant 0 : index
      %c0_72 = arith.constant 0 : index
      %78 = vector.load %arg2[%c2_70, %c0_71, %c0_72] : memref<7x16x32xf32, #tpu.memory_space<vmem>>, vector<1x16x32xf32>
      %79 = vector.shape_cast %78 : vector<1x16x32xf32> to vector<16x32xf32>
      %cst_73 = arith.constant dense<0.000000e+00> : vector<16x128xf32>
      %80 = tpu.matmul %79, %77, %cst_73 {dimension_numbers = #tpu.dot_dimension_numbers<[1], [0], [0], [1], [0, 0, 1, 1], [], []>} : vector<16x32xf32>, vector<32x128xf32>, vector<16x128xf32> -> vector<16x128xf32>
      %81 = arith.addf %76, %80 : vector<16x128xf32>
      %c3_74 = arith.constant 3 : index
      %c0_75 = arith.constant 0 : index
      %c0_76 = arith.constant 0 : index
      %82 = vector.load %arg2[%c3_74, %c0_75, %c0_76] : memref<7x16x32xf32, #tpu.memory_space<vmem>>, vector<1x16x32xf32>
      %83 = vector.shape_cast %82 : vector<1x16x32xf32> to vector<16x32xf32>
      %cst_77 = arith.constant dense<0.000000e+00> : vector<16x128xf32>
      %84 = tpu.matmul %83, %65, %cst_77 {dimension_numbers = #tpu.dot_dimension_numbers<[1], [0], [0], [1], [0, 0, 1, 1], [], []>} : vector<16x32xf32>, vector<32x128xf32>, vector<16x128xf32> -> vector<16x128xf32>
      %85 = arith.addf %81, %84 : vector<16x128xf32>
      %c127_i32_78 = arith.constant 127 : i32
      %86 = tpu.dynamic_rotate %65 by %c127_i32_78 dim 1 : vector<32x128xf32>, i32 -> vector<32x128xf32>
      %c4_79 = arith.constant 4 : index
      %c0_80 = arith.constant 0 : index
      %c0_81 = arith.constant 0 : index
      %87 = vector.load %arg2[%c4_79, %c0_80, %c0_81] : memref<7x16x32xf32, #tpu.memory_space<vmem>>, vector<1x16x32xf32>
      %88 = vector.shape_cast %87 : vector<1x16x32xf32> to vector<16x32xf32>
      %cst_82 = arith.constant dense<0.000000e+00> : vector<16x128xf32>
      %89 = tpu.matmul %88, %86, %cst_82 {dimension_numbers = #tpu.dot_dimension_numbers<[1], [0], [0], [1], [0, 0, 1, 1], [], []>} : vector<16x32xf32>, vector<32x128xf32>, vector<16x128xf32> -> vector<16x128xf32>
      %90 = arith.addf %85, %89 : vector<16x128xf32>
      %c126_i32_83 = arith.constant 126 : i32
      %91 = tpu.dynamic_rotate %65 by %c126_i32_83 dim 1 : vector<32x128xf32>, i32 -> vector<32x128xf32>
      %c5_84 = arith.constant 5 : index
      %c0_85 = arith.constant 0 : index
      %c0_86 = arith.constant 0 : index
      %92 = vector.load %arg2[%c5_84, %c0_85, %c0_86] : memref<7x16x32xf32, #tpu.memory_space<vmem>>, vector<1x16x32xf32>
      %93 = vector.shape_cast %92 : vector<1x16x32xf32> to vector<16x32xf32>
      %cst_87 = arith.constant dense<0.000000e+00> : vector<16x128xf32>
      %94 = tpu.matmul %93, %91, %cst_87 {dimension_numbers = #tpu.dot_dimension_numbers<[1], [0], [0], [1], [0, 0, 1, 1], [], []>} : vector<16x32xf32>, vector<32x128xf32>, vector<16x128xf32> -> vector<16x128xf32>
      %95 = arith.addf %90, %94 : vector<16x128xf32>
      %c125_i32_88 = arith.constant 125 : i32
      %96 = tpu.dynamic_rotate %65 by %c125_i32_88 dim 1 : vector<32x128xf32>, i32 -> vector<32x128xf32>
      %c6_89 = arith.constant 6 : index
      %c0_90 = arith.constant 0 : index
      %c0_91 = arith.constant 0 : index
      %97 = vector.load %arg2[%c6_89, %c0_90, %c0_91] : memref<7x16x32xf32, #tpu.memory_space<vmem>>, vector<1x16x32xf32>
      %98 = vector.shape_cast %97 : vector<1x16x32xf32> to vector<16x32xf32>
      %cst_92 = arith.constant dense<0.000000e+00> : vector<16x128xf32>
      %99 = tpu.matmul %98, %96, %cst_92 {dimension_numbers = #tpu.dot_dimension_numbers<[1], [0], [0], [1], [0, 0, 1, 1], [], []>} : vector<16x32xf32>, vector<32x128xf32>, vector<16x128xf32> -> vector<16x128xf32>
      %100 = arith.addf %95, %99 : vector<16x128xf32>
      %101 = arith.negf %100 : vector<16x128xf32>
      %102 = math.exp %101 : vector<16x128xf32>
      %cst_93 = arith.constant 1.000000e+00 : f32
      %103 = vector.broadcast %cst_93 : f32 to vector<16x128xf32>
      %104 = arith.addf %103, %102 : vector<16x128xf32>
      %105 = arith.divf %103, %104 : vector<16x128xf32>
      %106 = vector.extract_strided_slice %105 {offsets = [0, 0], sizes = [16, 16], strides = [1, 1]} : vector<16x128xf32> to vector<16x16xf32>
      %c1_94 = arith.constant 1 : index
      %c0_95 = arith.constant 0 : index
      %c0_96 = arith.constant 0 : index
      %c0_97 = arith.constant 0 : index
      %107 = vector.load %arg4[%c1_94, %c0_95, %c0_96, %c0_97] : memref<2x1x16x16xf32, #tpu.memory_space<vmem>>, vector<1x1x16x16xf32>
      %108 = vector.shape_cast %107 : vector<1x1x16x16xf32> to vector<16x16xf32>
      %109 = vector.shape_cast %106 : vector<16x16xf32> to vector<1x1x16x16xf32>
      tpu.vector_store %arg4[%c1_94, %c0_95, %c0_96, %c0_97], %109 {strides = array<i32>} : memref<2x1x16x16xf32, #tpu.memory_space<vmem>>, vector<1x1x16x16xf32>,
    } else {
    }
    return
  }
  func.func @transform_0(%arg0: i32, %arg1: i32) -> (i32, i32, i32) {
    %c0_i32 = arith.constant 0 : i32
    %c0_i32_0 = arith.constant 0 : i32
    %c0_i32_1 = arith.constant 0 : i32
    %c0_i32_2 = arith.constant 0 : i32
    return %c0_i32, %c0_i32_0, %c0_i32_1 : i32, i32, i32
  }
  func.func @transform_1(%arg0: i32, %arg1: i32) -> (i32, i32, i32, i32) {
    %c0_i32 = arith.constant 0 : i32
    %c0_i32_0 = arith.constant 0 : i32
    %c0_i32_1 = arith.constant 0 : i32
    return %arg0, %arg1, %c0_i32, %c0_i32_0 : i32, i32, i32, i32
  }
  func.func @transform_2(%arg0: i32, %arg1: i32) -> (i32, i32, i32, i32) {
    %c0_i32 = arith.constant 0 : i32
    %c0_i32_0 = arith.constant 0 : i32
    %c0_i32_1 = arith.constant 0 : i32
    %c0_i32_2 = arith.constant 0 : i32
    return %arg0, %c0_i32, %c0_i32_0, %c0_i32_1 : i32, i32, i32, i32
  }
}

</mosaic_0001>

<llo_original>
// kernel: tpu_custom_call.1
$region0: #{tpu_custom_call.1}
  #allocation0 [shape = 'u32[]', space=smem, size = 0x4, offset = 0x4, fixed_abs, tag = 'smem constant byte address 0x4 - core index']
  #allocation1 [shape = 'u32[144,128]{1,0:T(1,128)}', space=vmem, size = 0x12000, scoped, tag = 'internal scratch']
  #allocation2 [shape = 'f32[2,16,16]{2,1,0:T(8,128)}', space=vmem, size = 0x4000, scoped, tag = 'scratch operand']
  #allocation3 [shape = 'f32[2,16,16]{2,1,0:T(8,128)}', space=vmem, size = 0x4000, scoped, tag = 'scratch operand']
  #allocation4 [shape = 'f32[2,32,128]{2,1,0:T(8,128)}', space=vmem, size = 0x8000, scoped, tag = 'scratch operand']
  %s0 = inlined_call_operand.hbm [shape: f32[7,16,32], index: 0, kind: input, shape index: {}]
  %s1 = inlined_call_operand.hbm [shape: f32[2,4,16,16], index: 1, kind: input, shape index: {}]
  %s2 = inlined_call_operand.hbm [shape: f32[2,1,16,16], index: 2, kind: output, shape index: {}]
  %s3 = sld [smem:[#allocation0]]
  $region38: #{tpu_custom_call.1} parent=0
    _
  %s5 = ssub.s32 1, %s3
  %s6 = scalar_select 0, %s5, %s3
  $region1: #{tpu_custom_call.1} parent=0
    #allocation5 [shape = 'u8[57344]{0}', space=vmem, size = 0xe000, scoped, tag = 'input window, operand 0, single buffered']
    #allocation6 [shape = 's32[1]{0}', space=sflag, size = 0x4, scoped, tag = 'scoped memory for tpu_custom_call.1']
    #allocation7 [shape = 's32[1]{0}', space=sflag, size = 0x4, scoped, tag = 'scoped memory for tpu_custom_call.1']
    #allocation8 [shape = 'u8[65536]{0}', space=vmem, size = 0x10000, scoped, tag = 'input window, operand 1, single buffered']
    #allocation9 [shape = 's32[1]{0}', space=sflag, size = 0x4, scoped, tag = 'scoped memory for tpu_custom_call.1']
    #allocation10 [shape = 'u8[16384]{0}', space=vmem, size = 0x4000, scoped, tag = 'output window, operand 0, single buffered']
    %7 = vsyncpa [#allocation6], 0
    %8 = vsyncpa [#allocation9], 0
    %9 = vsyncpa [#allocation7], 0
    // Predicated region
    $region2: #{tpu_custom_call.1} parent=1 // pred_check
      _
    $region3: #{tpu_custom_call.1} parent=1 // pred_check_branch
      %11 = sbr.rel (0) target = $region5
    $region4: #{tpu_custom_call.1} parent=1 // pred_region
      %s13 = ssub.s32 1792, 1792
      %14 = vsyncadd [#allocation6], %s13
      %s15 = sshll.u32 [#allocation5], 4
      %s16 = int_to_ptr.vmem [resolvable:$true] %s15
      %21 = dma.hbm_to_vmem [thread:$0]  %s0, 1792, %s16, [#allocation6], 128, 128, 8
    $region5: #{tpu_custom_call.1} parent=1 // pred_fallthru
      _
    // Predicated region
    $region6: #{tpu_custom_call.1} parent=1 // pred_check
      _
    $region7: #{tpu_custom_call.1} parent=1 // pred_check_branch
      %23 = sbr.rel (0) target = $region9
    $region8: #{tpu_custom_call.1} parent=1 // pred_region
      %s25 = ssub.s32 2048, 2048
      %26 = vsyncadd [#allocation9], %s25
      %s27 = sshll.u32 [#allocation8], 4
      %s28 = int_to_ptr.vmem [resolvable:$true] %s27
      %33 = dma.hbm_to_vmem [thread:$0]  %s1, 2048, %s28, [#allocation9], 128, 128, 8
    $region9: #{tpu_custom_call.1} parent=1 // pred_fallthru
      _
    // Predicated region
    $region10: #{tpu_custom_call.1} parent=1 // pred_check
      _
    $region11: #{tpu_custom_call.1} parent=1 // pred_check_branch
      %35 = sbr.rel (0) target = $region13
    $region12: #{tpu_custom_call.1} parent=1 // pred_region
      %36 = dma.done [#allocation6], 1792
    $region13: #{tpu_custom_call.1} parent=1 // pred_fallthru
      _
    // Predicated region
    $region14: #{tpu_custom_call.1} parent=1 // pred_check
      _
    $region15: #{tpu_custom_call.1} parent=1 // pred_check_branch
      %38 = sbr.rel (0) target = $region17
    $region16: #{tpu_custom_call.1} parent=1 // pred_region
      %39 = dma.done [#allocation9], 2048
    $region17: #{tpu_custom_call.1} parent=1 // pred_fallthru
      _
    %v40 = vld [vmem:[#allocation8] sm:$0xff]
    %v41 = vld [vmem:[#allocation8 + $0x8] sm:$0xff]
    %v42 = vld [vmem:[#allocation8 + $0x10] sm:$0xff]
    %v43 = vld [vmem:[#allocation8 + $0x18] sm:$0xff]
    %v44 = vld [vmem:[#allocation8 + $0x20] sm:$0xff]
    %v45 = vld [vmem:[#allocation8 + $0x28] sm:$0xff]
    %v46 = vld [vmem:[#allocation8 + $0x30] sm:$0xff]
    %v47 = vld [vmem:[#allocation8 + $0x38] sm:$0xff]
    %v48 = vld [vmem:[#allocation8 + $0x40] sm:$0xff]
    %v49 = vld [vmem:[#allocation8 + $0x48] sm:$0xff]
    %v50 = vld [vmem:[#allocation8 + $0x50] sm:$0xff]
    %v51 = vld [vmem:[#allocation8 + $0x58] sm:$0xff]
    %v52 = vld [vmem:[#allocation8 + $0x60] sm:$0xff]
    %v53 = vld [vmem:[#allocation8 + $0x68] sm:$0xff]
    %v54 = vld [vmem:[#allocation8 + $0x70] sm:$0xff]
    %v55 = vld [vmem:[#allocation8 + $0x78] sm:$0xff]
    %vm56 = vcmask 130048
    %v57 = vsel %vm56, %v40, 0.0
    %v58 = vsel %vm56, %v42, 0.0
    %v59 = vadd.f32 %v57, %v58
    %v60 = vsel %vm56, %v44, 0.0
    %v61 = vadd.f32 %v59, %v60
    %v62 = vsel %vm56, %v46, 0.0
    %v63 = vadd.f32 %v61, %v62
    %v64 = vsel %vm56, %v41, 0.0
    %v65 = vsel %vm56, %v43, 0.0
    %v66 = vadd.f32 %v64, %v65
    %v67 = vsel %vm56, %v45, 0.0
    %v68 = vadd.f32 %v66, %v67
    %v69 = vsel %vm56, %v47, 0.0
    %v70 = vadd.f32 %v68, %v69
    %v71 = vsel %vm56, %v48, 0.0
    %v72 = vsel %vm56, %v50, 0.0
    %v73 = vadd.f32 %v71, %v72
    %v74 = vsel %vm56, %v52, 0.0
    %v75 = vadd.f32 %v73, %v74
    %v76 = vsel %vm56, %v54, 0.0
    %v77 = vadd.f32 %v75, %v76
    %v78 = vsel %vm56, %v49, 0.0
    %v79 = vsel %vm56, %v51, 0.0
    %v80 = vadd.f32 %v78, %v79
    %v81 = vsel %vm56, %v53, 0.0
    %v82 = vadd.f32 %v80, %v81
    %v83 = vsel %vm56, %v55, 0.0
    %v84 = vadd.f32 %v82, %v83
    %v85 = vsel %vm56, %v40, -inf
    %v86 = vsel %vm56, %v42, -inf
    %v87 = vmax.f32 %v85, %v86
    %v88 = vsel %vm56, %v44, -inf
    %v89 = vmax.f32 %v87, %v88
    %v90 = vsel %vm56, %v46, -inf
    %v91 = vmax.f32 %v89, %v90
    %v92 = vsel %vm56, %v41, -inf
    %v93 = vsel %vm56, %v43, -inf
    %v94 = vmax.f32 %v92, %v93
    %v95 = vsel %vm56, %v45, -inf
    %v96 = vmax.f32 %v94, %v95
    %v97 = vsel %vm56, %v47, -inf
    %v98 = vmax.f32 %v96, %v97
    %v99 = vsel %vm56, %v48, -inf
    %v100 = vsel %vm56, %v50, -inf
    %v101 = vmax.f32 %v99, %v100
    %v102 = vsel %vm56, %v52, -inf
    %v103 = vmax.f32 %v101, %v102
    %v104 = vsel %vm56, %v54, -inf
    %v105 = vmax.f32 %v103, %v104
    %v106 = vsel %vm56, %v49, -inf
    %v107 = vsel %vm56, %v51, -inf
    %v108 = vmax.f32 %v106, %v107
    %v109 = vsel %vm56, %v53, -inf
    %v110 = vmax.f32 %v108, %v109
    %v111 = vsel %vm56, %v55, -inf
    %v112 = vmax.f32 %v110, %v111
    %p113 = scmp.eq.s32.totalorder 0, 0
    // Predicated region
    $region18: #{tpu_custom_call.1} parent=1 // pred_check
      %p114 = pneg %p113
    $region19: #{tpu_custom_call.1} parent=1 // pred_check_branch
      %116 = sbr.rel (%p114) target = $region21
    $region20: #{tpu_custom_call.1} parent=1 // pred_region
      %117 = vst.msk [vmem:[#allocation2] sm:$0xff] %vm56, %v63
      %118 = vst.msk [vmem:[#allocation2 + $0x8] sm:$0xff] %vm56, %v70
      %119 = vst.msk [vmem:[#allocation2 + $0x10] sm:$0xff] %vm56, %v77
      %120 = vst.msk [vmem:[#allocation2 + $0x18] sm:$0xff] %vm56, %v84
      %121 = vst.msk [vmem:[#allocation3] sm:$0xff] %vm56, %v91
      %122 = vst.msk [vmem:[#allocation3 + $0x8] sm:$0xff] %vm56, %v98
      %123 = vst.msk [vmem:[#allocation3 + $0x10] sm:$0xff] %vm56, %v105
      %124 = vst.msk [vmem:[#allocation3 + $0x18] sm:$0xff] %vm56, %v112
    $region21: #{tpu_custom_call.1} parent=1 // pred_fallthru
      _
    %p125 = scmp.gt.s32.totalorder 0, 0
    // Predicated region
    $region22: #{tpu_custom_call.1} parent=1 // pred_check
      %p126 = pneg %p125
    $region23: #{tpu_custom_call.1} parent=1 // pred_check_branch
      %128 = sbr.rel (%p126) target = $region25
    $region24: #{tpu_custom_call.1} parent=1 // pred_region
      %v129 = vld [vmem:[#allocation2] sm:$0xff]
      %v130 = vld [vmem:[#allocation2 + $0x8] sm:$0xff]
      %v131 = vld [vmem:[#allocation2 + $0x10] sm:$0xff]
      %v132 = vld [vmem:[#allocation2 + $0x18] sm:$0xff]
      %v133 = vadd.f32 %v129, %v63
      %v134 = vadd.f32 %v130, %v70
      %v135 = vadd.f32 %v131, %v77
      %v136 = vadd.f32 %v132, %v84
      %137 = vst.msk [vmem:[#allocation2] sm:$0xff] %vm56, %v133
      %138 = vst.msk [vmem:[#allocation2 + $0x8] sm:$0xff] %vm56, %v134
      %139 = vst.msk [vmem:[#allocation2 + $0x10] sm:$0xff] %vm56, %v135
      %140 = vst.msk [vmem:[#allocation2 + $0x18] sm:$0xff] %vm56, %v136
      %v141 = vld [vmem:[#allocation3] sm:$0xff]
      %v142 = vld [vmem:[#allocation3 + $0x8] sm:$0xff]
      %v143 = vld [vmem:[#allocation3 + $0x10] sm:$0xff]
      %v144 = vld [vmem:[#allocation3 + $0x18] sm:$0xff]
      %v145 = vmax.f32 %v141, %v91
      %v146 = vmax.f32 %v142, %v98
      %v147 = vmax.f32 %v143, %v105
      %v148 = vmax.f32 %v144, %v112
      %149 = vst.msk [vmem:[#allocation3] sm:$0xff] %vm56, %v145
      %150 = vst.msk [vmem:[#allocation3 + $0x8] sm:$0xff] %vm56, %v146
      %151 = vst.msk [vmem:[#allocation3 + $0x10] sm:$0xff] %vm56, %v147
      %152 = vst.msk [vmem:[#allocation3 + $0x18] sm:$0xff] %vm56, %v148
    $region25: #{tpu_custom_call.1} parent=1 // pred_fallthru
      _
    // Predicated region
    $region26: #{tpu_custom_call.1} parent=1 // pred_check
      %p153 = pneg %p113
    $region27: #{tpu_custom_call.1} parent=1 // pred_check_branch
      %155 = sbr.rel (%p153) target = $region29
    $region28: #{tpu_custom_call.1} parent=1 // pred_region
      %156 = vst [vmem:[#allocation4] sm:$0xff] 0.0
      %157 = vst [vmem:[#allocation4 + $0x8] sm:$0xff] 0.0
      %158 = vst [vmem:[#allocation4 + $0x10] sm:$0xff] 0.0
      %159 = vst [vmem:[#allocation4 + $0x18] sm:$0xff] 0.0
      %160 = vst [vmem:[#allocation4 + $0x20] sm:$0xff] 0.0
      %161 = vst [vmem:[#allocation4 + $0x28] sm:$0xff] 0.0
      %162 = vst [vmem:[#allocation4 + $0x30] sm:$0xff] 0.0
      %163 = vst [vmem:[#allocation4 + $0x38] sm:$0xff] 0.0
      %v164 = vld [vmem:[#allocation2] sm:$0xff]
      %v165 = vld [vmem:[#allocation2 + $0x8] sm:$0xff]
      %v166 = vld [vmem:[#allocation2 + $0x10] sm:$0xff]
      %v167 = vld [vmem:[#allocation2 + $0x18] sm:$0xff]
      %168 = vst.msk [vmem:[#allocation4] sm:$0xff] %vm56, %v164
      %169 = vst.msk [vmem:[#allocation4 + $0x8] sm:$0xff] %vm56, %v165
      %170 = vst.msk [vmem:[#allocation4 + $0x20] sm:$0xff] %vm56, %v166
      %171 = vst.msk [vmem:[#allocation4 + $0x28] sm:$0xff] %vm56, %v167
      %v172 = vld [vmem:[#allocation3] sm:$0xff]
      %v173 = vld [vmem:[#allocation3 + $0x8] sm:$0xff]
      %v174 = vld [vmem:[#allocation3 + $0x10] sm:$0xff]
      %v175 = vld [vmem:[#allocation3 + $0x18] sm:$0xff]
      %176 = vst.msk [vmem:[#allocation4 + $0x10] sm:$0xff] %vm56, %v172
      %177 = vst.msk [vmem:[#allocation4 + $0x18] sm:$0xff] %vm56, %v173
      %178 = vst.msk [vmem:[#allocation4 + $0x30] sm:$0xff] %vm56, %v174
      %179 = vst.msk [vmem:[#allocation4 + $0x38] sm:$0xff] %vm56, %v175
      %v180 = vld [vmem:[#allocation4] sm:$0xff]
      %v181 = vld [vmem:[#allocation4 + $0x8] sm:$0xff]
      %v182 = vld [vmem:[#allocation4 + $0x10] sm:$0xff]
      %v183 = vld [vmem:[#allocation4 + $0x18] sm:$0xff]
      %184 = vrot.lane.b32.xlu0 %v180, 3
      %v185 = vpop.permute.xlu0 %184
      %186 = vrot.lane.b32.xlu0 %v181, 3
      %v187 = vpop.permute.xlu0 %186
      %188 = vrot.lane.b32.xlu0 %v182, 3
      %v189 = vpop.permute.xlu0 %188
      %190 = vrot.lane.b32.xlu0 %v183, 3
      %v191 = vpop.permute.xlu0 %190
      %v192 = vld [vmem:[#allocation5] sm:$0xff]
      %v193 = vld [vmem:[#allocation5 + $0x8] sm:$0xff]
      %194 = vrot.lane.b32.xlu0 %v180, 2
      %v195 = vpop.permute.xlu0 %194
      %196 = vrot.lane.b32.xlu0 %v181, 2
      %v197 = vpop.permute.xlu0 %196
      %198 = vrot.lane.b32.xlu0 %v182, 2
      %v199 = vpop.permute.xlu0 %198
      %200 = vrot.lane.b32.xlu0 %v183, 2
      %v201 = vpop.permute.xlu0 %200
      %s202 = scalar_lea.vmem [#allocation5], 16
      %v203 = vld [vmem:[%s202] sm:$0xff]
      %v204 = vld [vmem:[%s202 + $0x8] sm:$0xff]
      %vm205 = vcmask 261120
      %v207 = vsel %vm205, %v203, 0
      %v210 = vsel %vm205, %v204, 0
      %212 = vmatprep.subr.mxu0 0.0
      %213 = vmatpush1.msra.mxu0 %v195
      %214 = vmatprep.subr.mxu0 0.0
      %215 = vmatpush1.msra.mxu0 %v197
      %216 = vmatprep.subr.mxu0 0.0
      %217 = vmatpush1.msra.mxu0 %v199
      %218 = vmatprep.subr.mxu0 0.0
      %219 = vmatpush1.msra.mxu0 %v201
      %220 = vmatprep.subr.mxu0 0.0
      %221 = vmatpush1.msra.mxu0 0.0
      %222 = vmatprep.subr.mxu0 0.0
      %223 = vmatpush1.msra.mxu0 0.0
      %224 = vmatprep.subr.mxu0 0.0
      %225 = vmatpush1.msra.mxu0 0.0
      %226 = vmatprep.subr.mxu0 0.0
      %227 = vmatpush1.msra.mxu0 0.0
      %228 = vmatprep.subr.mxu0 0.0
      %229 = vmatpush1.msra.mxu0 0.0
      %230 = vmatprep.subr.mxu0 0.0
      %231 = vmatpush1.msra.mxu0 0.0
      %232 = vmatprep.subr.mxu0 0.0
      %233 = vmatpush1.msra.mxu0 0.0
      %234 = vmatprep.subr.mxu0 0.0
      %235 = vmatpush1.msra.mxu0 0.0
      %236 = vmatprep.subr.mxu0 0.0
      %237 = vmatpush1.msra.mxu0 0.0
      %238 = vmatprep.subr.mxu0 0.0
      %239 = vmatpush1.msra.mxu0 0.0
      %240 = vmatprep.subr.mxu0 0.0
      %241 = vmatpush1.msra.mxu0 0.0
      %242 = vmatprep.subr.mxu0 0.0
      %243 = vmatpush1.msra.mxu0 0.0
      %244 = vmatprep.subr.mxu0 0.0
      %245 = vmatpush1.msra.mxu0 0.0
      %246 = vmatprep.subr.mxu0 0.0
      %247 = vmatpush1.msra.mxu0 0.0
      %248 = vmatprep.subr.mxu0 0.0
      %249 = vmatpush1.msra.mxu0 0.0
      %250 = vmatprep.subr.mxu0 0.0
      %251 = vmatpush1.msra.mxu0 0.0
      %252 = vmatprep.subr.mxu0 0.0
      %253 = vmatpush1.msra.mxu0 0.0
      %254 = vmatprep.subr.mxu0 0.0
      %255 = vmatpush1.msra.mxu0 0.0
      %256 = vmatprep.subr.mxu0 0.0
      %257 = vmatpush1.msra.mxu0 0.0
      %258 = vmatprep.subr.mxu0 0.0
      %259 = vmatpush1.msra.mxu0 0.0
      %260 = vmatprep.subr.mxu0 0.0
      %261 = vmatpush1.msra.mxu0 0.0
      %262 = vmatprep.subr.mxu0 0.0
      %263 = vmatpush1.msra.mxu0 0.0
      %264 = vmatprep.subr.mxu0 0.0
      %265 = vmatpush1.msra.mxu0 0.0
      %266 = vmatprep.subr.mxu0 0.0
      %267 = vmatpush1.msra.mxu0 0.0
      %268 = vmatprep.subr.mxu0 0.0
      %269 = vmatpush1.msra.mxu0 0.0
      %270 = vmatprep.subr.mxu0 0.0
      %271 = vmatpush1.msra.mxu0 0.0
      %272 = vmatprep.subr.mxu0 0.0
      %273 = vmatpush1.msra.mxu0 0.0
      %274 = vmatprep.subr.mxu0 0.0
      %275 = vmatpush1.msra.mxu0 0.0
      %276 = vmatprep.mubr.f32.mxu0 0.0
      %277 = vmatmul.mubr.f32.gmra.mrb[0].mxu0 %v207
      %v278 = vpop.f32.mrb[0].mxu0
      %v279 = vadd.f32 0.0, %v278
      %v280 = vpop.f32.mrb[0].mxu0
      %281 = vmatprep.mubr.f32.mxu0 0.0
      %282 = vmatmul.mubr.f32.gmra.mrb[0].mxu0 %v210
      %v283 = vpop.f32.mrb[0].mxu0
      %v284 = vadd.f32 0.0, %v283
      %v285 = vpop.f32.mrb[0].mxu0
      %286 = vdwg.mxu0
      %v288 = vsel %vm205, %v192, 0
      %v291 = vsel %vm205, %v193, 0
      %293 = vmatprep.subr.mxu0 0.0
      %294 = vmatpush1.msra.mxu0 %v185
      %295 = vmatprep.subr.mxu0 0.0
      %296 = vmatpush1.msra.mxu0 %v187
      %297 = vmatprep.subr.mxu0 0.0
      %298 = vmatpush1.msra.mxu0 %v189
      %299 = vmatprep.subr.mxu0 0.0
      %300 = vmatpush1.msra.mxu0 %v191
      %301 = vmatprep.subr.mxu0 0.0
      %302 = vmatpush1.msra.mxu0 0.0
      %303 = vmatprep.subr.mxu0 0.0
      %304 = vmatpush1.msra.mxu0 0.0
      %305 = vmatprep.subr.mxu0 0.0
      %306 = vmatpush1.msra.mxu0 0.0
      %307 = vmatprep.subr.mxu0 0.0
      %308 = vmatpush1.msra.mxu0 0.0
      %309 = vmatprep.subr.mxu0 0.0
      %310 = vmatpush1.msra.mxu0 0.0
      %311 = vmatprep.subr.mxu0 0.0
      %312 = vmatpush1.msra.mxu0 0.0
      %313 = vmatprep.subr.mxu0 0.0
      %314 = vmatpush1.msra.mxu0 0.0
      %315 = vmatprep.subr.mxu0 0.0
      %316 = vmatpush1.msra.mxu0 0.0
      %317 = vmatprep.subr.mxu0 0.0
      %318 = vmatpush1.msra.mxu0 0.0
      %319 = vmatprep.subr.mxu0 0.0
      %320 = vmatpush1.msra.mxu0 0.0
      %321 = vmatprep.subr.mxu0 0.0
      %322 = vmatpush1.msra.mxu0 0.0
      %323 = vmatprep.subr.mxu0 0.0
      %324 = vmatpush1.msra.mxu0 0.0
      %325 = vmatprep.subr.mxu0 0.0
      %326 = vmatpush1.msra.mxu0 0.0
      %327 = vmatprep.subr.mxu0 0.0
      %328 = vmatpush1.msra.mxu0 0.0
      %329 = vmatprep.subr.mxu0 0.0
      %330 = vmatpush1.msra.mxu0 0.0
      %331 = vmatprep.subr.mxu0 0.0
      %332 = vmatpush1.msra.mxu0 0.0
      %333 = vmatprep.subr.mxu0 0.0
      %334 = vmatpush1.msra.mxu0 0.0
      %335 = vmatprep.subr.mxu0 0.0
      %336 = vmatpush1.msra.mxu0 0.0
      %337 = vmatprep.subr.mxu0 0.0
      %338 = vmatpush1.msra.mxu0 0.0
      %339 = vmatprep.subr.mxu0 0.0
      %340 = vmatpush1.msra.mxu0 0.0
      %341 = vmatprep.subr.mxu0 0.0
      %342 = vmatpush1.msra.mxu0 0.0
      %343 = vmatprep.subr.mxu0 0.0
      %344 = vmatpush1.msra.mxu0 0.0
      %345 = vmatprep.subr.mxu0 0.0
      %346 = vmatpush1.msra.mxu0 0.0
      %347 = vmatprep.subr.mxu0 0.0
      %348 = vmatpush1.msra.mxu0 0.0
      %349 = vmatprep.subr.mxu0 0.0
      %350 = vmatpush1.msra.mxu0 0.0
      %351 = vmatprep.subr.mxu0 0.0
      %352 = vmatpush1.msra.mxu0 0.0
      %353 = vmatprep.subr.mxu0 0.0
      %354 = vmatpush1.msra.mxu0 0.0
      %355 = vmatprep.subr.mxu0 0.0
      %356 = vmatpush1.msra.mxu0 0.0
      %357 = vmatprep.mubr.f32.mxu0 0.0
      %358 = vmatmul.mubr.f32.gmra.mrb[0].mxu0 %v288
      %v359 = vpop.f32.mrb[0].mxu0
      %v360 = vadd.f32 %v279, %v359
      %v361 = vpop.f32.mrb[0].mxu0
      %362 = vmatprep.mubr.f32.mxu0 0.0
      %363 = vmatmul.mubr.f32.gmra.mrb[0].mxu0 %v291
      %v364 = vpop.f32.mrb[0].mxu0
      %v365 = vadd.f32 %v284, %v364
      %v366 = vpop.f32.mrb[0].mxu0
      %367 = vdwg.mxu0
      %368 = vrot.lane.b32.xlu0 %v180, 1
      %v369 = vpop.permute.xlu0 %368
      %370 = vrot.lane.b32.xlu0 %v181, 1
      %v371 = vpop.permute.xlu0 %370
      %372 = vrot.lane.b32.xlu0 %v182, 1
      %v373 = vpop.permute.xlu0 %372
      %374 = vrot.lane.b32.xlu0 %v183, 1
      %v375 = vpop.permute.xlu0 %374
      %s376 = scalar_lea.vmem [#allocation5], 32
      %v377 = vld [vmem:[%s376] sm:$0xff]
      %v378 = vld [vmem:[%s376 + $0x8] sm:$0xff]
      %v380 = vsel %vm205, %v377, 0
      %v383 = vsel %vm205, %v378, 0
      %385 = vmatprep.subr.mxu0 0.0
      %386 = vmatpush1.msra.mxu0 %v369
      %387 = vmatprep.subr.mxu0 0.0
      %388 = vmatpush1.msra.mxu0 %v371
      %389 = vmatprep.subr.mxu0 0.0
      %390 = vmatpush1.msra.mxu0 %v373
      %391 = vmatprep.subr.mxu0 0.0
      %392 = vmatpush1.msra.mxu0 %v375
      %393 = vmatprep.subr.mxu0 0.0
      %394 = vmatpush1.msra.mxu0 0.0
      %395 = vmatprep.subr.mxu0 0.0
      %396 = vmatpush1.msra.mxu0 0.0
      %397 = vmatprep.subr.mxu0 0.0
      %398 = vmatpush1.msra.mxu0 0.0
      %399 = vmatprep.subr.mxu0 0.0
      %400 = vmatpush1.msra.mxu0 0.0
      %401 = vmatprep.subr.mxu0 0.0
      %402 = vmatpush1.msra.mxu0 0.0
      %403 = vmatprep.subr.mxu0 0.0
      %404 = vmatpush1.msra.mxu0 0.0
      %405 = vmatprep.subr.mxu0 0.0
      %406 = vmatpush1.msra.mxu0 0.0
      %407 = vmatprep.subr.mxu0 0.0
      %408 = vmatpush1.msra.mxu0 0.0
      %409 = vmatprep.subr.mxu0 0.0
      %410 = vmatpush1.msra.mxu0 0.0
      %411 = vmatprep.subr.mxu0 0.0
      %412 = vmatpush1.msra.mxu0 0.0
      %413 = vmatprep.subr.mxu0 0.0
      %414 = vmatpush1.msra.mxu0 0.0
      %415 = vmatprep.subr.mxu0 0.0
      %416 = vmatpush1.msra.mxu0 0.0
      %417 = vmatprep.subr.mxu0 0.0
      %418 = vmatpush1.msra.mxu0 0.0
      %419 = vmatprep.subr.mxu0 0.0
      %420 = vmatpush1.msra.mxu0 0.0
      %421 = vmatprep.subr.mxu0 0.0
      %422 = vmatpush1.msra.mxu0 0.0
      %423 = vmatprep.subr.mxu0 0.0
      %424 = vmatpush1.msra.mxu0 0.0
      %425 = vmatprep.subr.mxu0 0.0
      %426 = vmatpush1.msra.mxu0 0.0
      %427 = vmatprep.subr.mxu0 0.0
      %428 = vmatpush1.msra.mxu0 0.0
      %429 = vmatprep.subr.mxu0 0.0
      %430 = vmatpush1.msra.mxu0 0.0
      %431 = vmatprep.subr.mxu0 0.0
      %432 = vmatpush1.msra.mxu0 0.0
      %433 = vmatprep.subr.mxu0 0.0
      %434 = vmatpush1.msra.mxu0 0.0
      %435 = vmatprep.subr.mxu0 0.0
      %436 = vmatpush1.msra.mxu0 0.0
      %437 = vmatprep.subr.mxu0 0.0
      %438 = vmatpush1.msra.mxu0 0.0
      %439 = vmatprep.subr.mxu0 0.0
      %440 = vmatpush1.msra.mxu0 0.0
      %441 = vmatprep.subr.mxu0 0.0
      %442 = vmatpush1.msra.mxu0 0.0
      %443 = vmatprep.subr.mxu0 0.0
      %444 = vmatpush1.msra.mxu0 0.0
      %445 = vmatprep.subr.mxu0 0.0
      %446 = vmatpush1.msra.mxu0 0.0
      %447 = vmatprep.subr.mxu0 0.0
      %448 = vmatpush1.msra.mxu0 0.0
      %449 = vmatprep.mubr.f32.mxu0 0.0
      %450 = vmatmul.mubr.f32.gmra.mrb[0].mxu0 %v380
      %v451 = vpop.f32.mrb[0].mxu0
      %v452 = vadd.f32 0.0, %v451
      %v453 = vpop.f32.mrb[0].mxu0
      %454 = vmatprep.mubr.f32.mxu0 0.0
      %455 = vmatmul.mubr.f32.gmra.mrb[0].mxu0 %v383
      %v456 = vpop.f32.mrb[0].mxu0
      %v457 = vadd.f32 0.0, %v456
      %v458 = vpop.f32.mrb[0].mxu0
      %459 = vdwg.mxu0
      %v460 = vadd.f32 %v360, %v452
      %v461 = vadd.f32 %v365, %v457
      %s462 = scalar_lea.vmem [#allocation5], 48
      %v463 = vld [vmem:[%s462] sm:$0xff]
      %v464 = vld [vmem:[%s462 + $0x8] sm:$0xff]
      %v466 = vsel %vm205, %v463, 0
      %v469 = vsel %vm205, %v464, 0
      %471 = vmatprep.subr.mxu0 0.0
      %472 = vmatpush1.msra.mxu0 %v180
      %473 = vmatprep.subr.mxu0 0.0
      %474 = vmatpush1.msra.mxu0 %v181
      %475 = vmatprep.subr.mxu0 0.0
      %476 = vmatpush1.msra.mxu0 %v182
      %477 = vmatprep.subr.mxu0 0.0
      %478 = vmatpush1.msra.mxu0 %v183
      %479 = vmatprep.subr.mxu0 0.0
      %480 = vmatpush1.msra.mxu0 0.0
      %481 = vmatprep.subr.mxu0 0.0
      %482 = vmatpush1.msra.mxu0 0.0
      %483 = vmatprep.subr.mxu0 0.0
      %484 = vmatpush1.msra.mxu0 0.0
      %485 = vmatprep.subr.mxu0 0.0
      %486 = vmatpush1.msra.mxu0 0.0
      %487 = vmatprep.subr.mxu0 0.0
      %488 = vmatpush1.msra.mxu0 0.0
      %489 = vmatprep.subr.mxu0 0.0
      %490 = vmatpush1.msra.mxu0 0.0
      %491 = vmatprep.subr.mxu0 0.0
      %492 = vmatpush1.msra.mxu0 0.0
      %493 = vmatprep.subr.mxu0 0.0
      %494 = vmatpush1.msra.mxu0 0.0
      %495 = vmatprep.subr.mxu0 0.0
      %496 = vmatpush1.msra.mxu0 0.0
      %497 = vmatprep.subr.mxu0 0.0
      %498 = vmatpush1.msra.mxu0 0.0
      %499 = vmatprep.subr.mxu0 0.0
      %500 = vmatpush1.msra.mxu0 0.0
      %501 = vmatprep.subr.mxu0 0.0
      %502 = vmatpush1.msra.mxu0 0.0
      %503 = vmatprep.subr.mxu0 0.0
      %504 = vmatpush1.msra.mxu0 0.0
      %505 = vmatprep.subr.mxu0 0.0
      %506 = vmatpush1.msra.mxu0 0.0
      %507 = vmatprep.subr.mxu0 0.0
      %508 = vmatpush1.msra.mxu0 0.0
      %509 = vmatprep.subr.mxu0 0.0
      %510 = vmatpush1.msra.mxu0 0.0
      %511 = vmatprep.subr.mxu0 0.0
      %512 = vmatpush1.msra.mxu0 0.0
      %513 = vmatprep.subr.mxu0 0.0
      %514 = vmatpush1.msra.mxu0 0.0
      %515 = vmatprep.subr.mxu0 0.0
      %516 = vmatpush1.msra.mxu0 0.0
      %517 = vmatprep.subr.mxu0 0.0
      %518 = vmatpush1.msra.mxu0 0.0
      %519 = vmatprep.subr.mxu0 0.0
      %520 = vmatpush1.msra.mxu0 0.0
      %521 = vmatprep.subr.mxu0 0.0
      %522 = vmatpush1.msra.mxu0 0.0
      %523 = vmatprep.subr.mxu0 0.0
      %524 = vmatpush1.msra.mxu0 0.0
      %525 = vmatprep.subr.mxu0 0.0
      %526 = vmatpush1.msra.mxu0 0.0
      %527 = vmatprep.subr.mxu0 0.0
      %528 = vmatpush1.msra.mxu0 0.0
      %529 = vmatprep.subr.mxu0 0.0
      %530 = vmatpush1.msra.mxu0 0.0
      %531 = vmatprep.subr.mxu0 0.0
      %532 = vmatpush1.msra.mxu0 0.0
      %533 = vmatprep.subr.mxu0 0.0
      %534 = vmatpush1.msra.mxu0 0.0
      %535 = vmatprep.mubr.f32.mxu0 0.0
      %536 = vmatmul.mubr.f32.gmra.mrb[0].mxu0 %v466
      %v537 = vpop.f32.mrb[0].mxu0
      %v538 = vadd.f32 0.0, %v537
      %v539 = vpop.f32.mrb[0].mxu0
      %540 = vmatprep.mubr.f32.mxu0 0.0
      %541 = vmatmul.mubr.f32.gmra.mrb[0].mxu0 %v469
      %v542 = vpop.f32.mrb[0].mxu0
      %v543 = vadd.f32 0.0, %v542
      %v544 = vpop.f32.mrb[0].mxu0
      %545 = vdwg.mxu0
      %v546 = vadd.f32 %v460, %v538
      %v547 = vadd.f32 %v461, %v543
      %548 = vrot.lane.b32.xlu0 %v180, 127
      %v549 = vpop.permute.xlu0 %548
      %550 = vrot.lane.b32.xlu0 %v181, 127
      %v551 = vpop.permute.xlu0 %550
      %552 = vrot.lane.b32.xlu0 %v182, 127
      %v553 = vpop.permute.xlu0 %552
      %554 = vrot.lane.b32.xlu0 %v183, 127
      %v555 = vpop.permute.xlu0 %554
      %s556 = scalar_lea.vmem [#allocation5], 64
      %v557 = vld [vmem:[%s556] sm:$0xff]
      %v558 = vld [vmem:[%s556 + $0x8] sm:$0xff]
      %v560 = vsel %vm205, %v557, 0
      %v563 = vsel %vm205, %v558, 0
      %565 = vmatprep.subr.mxu0 0.0
      %566 = vmatpush1.msra.mxu0 %v549
      %567 = vmatprep.subr.mxu0 0.0
      %568 = vmatpush1.msra.mxu0 %v551
      %569 = vmatprep.subr.mxu0 0.0
      %570 = vmatpush1.msra.mxu0 %v553
      %571 = vmatprep.subr.mxu0 0.0
      %572 = vmatpush1.msra.mxu0 %v555
      %573 = vmatprep.subr.mxu0 0.0
      %574 = vmatpush1.msra.mxu0 0.0
      %575 = vmatprep.subr.mxu0 0.0
      %576 = vmatpush1.msra.mxu0 0.0
      %577 = vmatprep.subr.mxu0 0.0
      %578 = vmatpush1.msra.mxu0 0.0
      %579 = vmatprep.subr.mxu0 0.0
      %580 = vmatpush1.msra.mxu0 0.0
      %581 = vmatprep.subr.mxu0 0.0
      %582 = vmatpush1.msra.mxu0 0.0
      %583 = vmatprep.subr.mxu0 0.0
      %584 = vmatpush1.msra.mxu0 0.0
      %585 = vmatprep.subr.mxu0 0.0
      %586 = vmatpush1.msra.mxu0 0.0
      %587 = vmatprep.subr.mxu0 0.0
      %588 = vmatpush1.msra.mxu0 0.0
      %589 = vmatprep.subr.mxu0 0.0
      %590 = vmatpush1.msra.mxu0 0.0
      %591 = vmatprep.subr.mxu0 0.0
      %592 = vmatpush1.msra.mxu0 0.0
      %593 = vmatprep.subr.mxu0 0.0
      %594 = vmatpush1.msra.mxu0 0.0
      %595 = vmatprep.subr.mxu0 0.0
      %596 = vmatpush1.msra.mxu0 0.0
      %597 = vmatprep.subr.mxu0 0.0
      %598 = vmatpush1.msra.mxu0 0.0
      %599 = vmatprep.subr.mxu0 0.0
      %600 = vmatpush1.msra.mxu0 0.0
      %601 = vmatprep.subr.mxu0 0.0
      %602 = vmatpush1.msra.mxu0 0.0
      %603 = vmatprep.subr.mxu0 0.0
      %604 = vmatpush1.msra.mxu0 0.0
      %605 = vmatprep.subr.mxu0 0.0
      %606 = vmatpush1.msra.mxu0 0.0
      %607 = vmatprep.subr.mxu0 0.0
      %608 = vmatpush1.msra.mxu0 0.0
      %609 = vmatprep.subr.mxu0 0.0
      %610 = vmatpush1.msra.mxu0 0.0
      %611 = vmatprep.subr.mxu0 0.0
      %612 = vmatpush1.msra.mxu0 0.0
      %613 = vmatprep.subr.mxu0 0.0
      %614 = vmatpush1.msra.mxu0 0.0
      %615 = vmatprep.subr.mxu0 0.0
      %616 = vmatpush1.msra.mxu0 0.0
      %617 = vmatprep.subr.mxu0 0.0
      %618 = vmatpush1.msra.mxu0 0.0
      %619 = vmatprep.subr.mxu0 0.0
      %620 = vmatpush1.msra.mxu0 0.0
      %621 = vmatprep.subr.mxu0 0.0
      %622 = vmatpush1.msra.mxu0 0.0
      %623 = vmatprep.subr.mxu0 0.0
      %624 = vmatpush1.msra.mxu0 0.0
      %625 = vmatprep.subr.mxu0 0.0
      %626 = vmatpush1.msra.mxu0 0.0
      %627 = vmatprep.subr.mxu0 0.0
      %628 = vmatpush1.msra.mxu0 0.0
      %629 = vmatprep.mubr.f32.mxu0 0.0
      %630 = vmatmul.mubr.f32.gmra.mrb[0].mxu0 %v560
      %v631 = vpop.f32.mrb[0].mxu0
      %v632 = vadd.f32 0.0, %v631
      %v633 = vpop.f32.mrb[0].mxu0
      %634 = vmatprep.mubr.f32.mxu0 0.0
      %635 = vmatmul.mubr.f32.gmra.mrb[0].mxu0 %v563
      %v636 = vpop.f32.mrb[0].mxu0
      %v637 = vadd.f32 0.0, %v636
      %v638 = vpop.f32.mrb[0].mxu0
      %639 = vdwg.mxu0
      %v640 = vadd.f32 %v546, %v632
      %v641 = vadd.f32 %v547, %v637
      %642 = vrot.lane.b32.xlu0 %v180, 126
      %v643 = vpop.permute.xlu0 %642
      %644 = vrot.lane.b32.xlu0 %v181, 126
      %v645 = vpop.permute.xlu0 %644
      %646 = vrot.lane.b32.xlu0 %v182, 126
      %v647 = vpop.permute.xlu0 %646
      %648 = vrot.lane.b32.xlu0 %v183, 126
      %v649 = vpop.permute.xlu0 %648
      %s650 = scalar_lea.vmem [#allocation5], 80
      %v651 = vld [vmem:[%s650] sm:$0xff]
      %v652 = vld [vmem:[%s650 + $0x8] sm:$0xff]
      %v654 = vsel %vm205, %v651, 0
      %v657 = vsel %vm205, %v652, 0
      %659 = vmatprep.subr.mxu0 0.0
      %660 = vmatpush1.msra.mxu0 %v643
      %661 = vmatprep.subr.mxu0 0.0
      %662 = vmatpush1.msra.mxu0 %v645
      %663 = vmatprep.subr.mxu0 0.0
      %664 = vmatpush1.msra.mxu0 %v647
      %665 = vmatprep.subr.mxu0 0.0
      %666 = vmatpush1.msra.mxu0 %v649
      %667 = vmatprep.subr.mxu0 0.0
      %668 = vmatpush1.msra.mxu0 0.0
      %669 = vmatprep.subr.mxu0 0.0
      %670 = vmatpush1.msra.mxu0 0.0
      %671 = vmatprep.subr.mxu0 0.0
      %672 = vmatpush1.msra.mxu0 0.0
      %673 = vmatprep.subr.mxu0 0.0
      %674 = vmatpush1.msra.mxu0 0.0
      %675 = vmatprep.subr.mxu0 0.0
      %676 = vmatpush1.msra.mxu0 0.0
      %677 = vmatprep.subr.mxu0 0.0
      %678 = vmatpush1.msra.mxu0 0.0
      %679 = vmatprep.subr.mxu0 0.0
      %680 = vmatpush1.msra.mxu0 0.0
      %681 = vmatprep.subr.mxu0 0.0
      %682 = vmatpush1.msra.mxu0 0.0
      %683 = vmatprep.subr.mxu0 0.0
      %684 = vmatpush1.msra.mxu0 0.0
      %685 = vmatprep.subr.mxu0 0.0
      %686 = vmatpush1.msra.mxu0 0.0
      %687 = vmatprep.subr.mxu0 0.0
      %688 = vmatpush1.msra.mxu0 0.0
      %689 = vmatprep.subr.mxu0 0.0
      %690 = vmatpush1.msra.mxu0 0.0
      %691 = vmatprep.subr.mxu0 0.0
      %692 = vmatpush1.msra.mxu0 0.0
      %693 = vmatprep.subr.mxu0 0.0
      %694 = vmatpush1.msra.mxu0 0.0
      %695 = vmatprep.subr.mxu0 0.0
      %696 = vmatpush1.msra.mxu0 0.0
      %697 = vmatprep.subr.mxu0 0.0
      %698 = vmatpush1.msra.mxu0 0.0
      %699 = vmatprep.subr.mxu0 0.0
      %700 = vmatpush1.msra.mxu0 0.0
      %701 = vmatprep.subr.mxu0 0.0
      %702 = vmatpush1.msra.mxu0 0.0
      %703 = vmatprep.subr.mxu0 0.0
      %704 = vmatpush1.msra.mxu0 0.0
      %705 = vmatprep.subr.mxu0 0.0
      %706 = vmatpush1.msra.mxu0 0.0
      %707 = vmatprep.subr.mxu0 0.0
      %708 = vmatpush1.msra.mxu0 0.0
      %709 = vmatprep.subr.mxu0 0.0
      %710 = vmatpush1.msra.mxu0 0.0
      %711 = vmatprep.subr.mxu0 0.0
      %712 = vmatpush1.msra.mxu0 0.0
      %713 = vmatprep.subr.mxu0 0.0
      %714 = vmatpush1.msra.mxu0 0.0
      %715 = vmatprep.subr.mxu0 0.0
      %716 = vmatpush1.msra.mxu0 0.0
      %717 = vmatprep.subr.mxu0 0.0
      %718 = vmatpush1.msra.mxu0 0.0
      %719 = vmatprep.subr.mxu0 0.0
      %720 = vmatpush1.msra.mxu0 0.0
      %721 = vmatprep.subr.mxu0 0.0
      %722 = vmatpush1.msra.mxu0 0.0
      %723 = vmatprep.mubr.f32.mxu0 0.0
      %724 = vmatmul.mubr.f32.gmra.mrb[0].mxu0 %v654
      %v725 = vpop.f32.mrb[0].mxu0
      %v726 = vadd.f32 0.0, %v725
      %v727 = vpop.f32.mrb[0].mxu0
      %728 = vmatprep.mubr.f32.mxu0 0.0
      %729 = vmatmul.mubr.f32.gmra.mrb[0].mxu0 %v657
      %v730 = vpop.f32.mrb[0].mxu0
      %v731 = vadd.f32 0.0, %v730
      %v732 = vpop.f32.mrb[0].mxu0
      %733 = vdwg.mxu0
      %v734 = vadd.f32 %v640, %v726
      %v735 = vadd.f32 %v641, %v731
      %736 = vrot.lane.b32.xlu0 %v180, 125
      %v737 = vpop.permute.xlu0 %736
      %738 = vrot.lane.b32.xlu0 %v181, 125
      %v739 = vpop.permute.xlu0 %738
      %740 = vrot.lane.b32.xlu0 %v182, 125
      %v741 = vpop.permute.xlu0 %740
      %742 = vrot.lane.b32.xlu0 %v183, 125
      %v743 = vpop.permute.xlu0 %742
      %s744 = scalar_lea.vmem [#allocation5], 96
      %v745 = vld [vmem:[%s744] sm:$0xff]
      %v746 = vld [vmem:[%s744 + $0x8] sm:$0xff]
      %v748 = vsel %vm205, %v745, 0
      %v751 = vsel %vm205, %v746, 0
      %753 = vmatprep.subr.mxu0 0.0
      %754 = vmatpush1.msra.mxu0 %v737
      %755 = vmatprep.subr.mxu0 0.0
      %756 = vmatpush1.msra.mxu0 %v739
      %757 = vmatprep.subr.mxu0 0.0
      %758 = vmatpush1.msra.mxu0 %v741
      %759 = vmatprep.subr.mxu0 0.0
      %760 = vmatpush1.msra.mxu0 %v743
      %761 = vmatprep.subr.mxu0 0.0
      %762 = vmatpush1.msra.mxu0 0.0
      %763 = vmatprep.subr.mxu0 0.0
      %764 = vmatpush1.msra.mxu0 0.0
      %765 = vmatprep.subr.mxu0 0.0
      %766 = vmatpush1.msra.mxu0 0.0
      %767 = vmatprep.subr.mxu0 0.0
      %768 = vmatpush1.msra.mxu0 0.0
      %769 = vmatprep.subr.mxu0 0.0
      %770 = vmatpush1.msra.mxu0 0.0
      %771 = vmatprep.subr.mxu0 0.0
      %772 = vmatpush1.msra.mxu0 0.0
      %773 = vmatprep.subr.mxu0 0.0
      %774 = vmatpush1.msra.mxu0 0.0
      %775 = vmatprep.subr.mxu0 0.0
      %776 = vmatpush1.msra.mxu0 0.0
      %777 = vmatprep.subr.mxu0 0.0
      %778 = vmatpush1.msra.mxu0 0.0
      %779 = vmatprep.subr.mxu0 0.0
      %780 = vmatpush1.msra.mxu0 0.0
      %781 = vmatprep.subr.mxu0 0.0
      %782 = vmatpush1.msra.mxu0 0.0
      %783 = vmatprep.subr.mxu0 0.0
      %784 = vmatpush1.msra.mxu0 0.0
      %785 = vmatprep.subr.mxu0 0.0
      %786 = vmatpush1.msra.mxu0 0.0
      %787 = vmatprep.subr.mxu0 0.0
      %788 = vmatpush1.msra.mxu0 0.0
      %789 = vmatprep.subr.mxu0 0.0
      %790 = vmatpush1.msra.mxu0 0.0
      %791 = vmatprep.subr.mxu0 0.0
      %792 = vmatpush1.msra.mxu0 0.0
      %793 = vmatprep.subr.mxu0 0.0
      %794 = vmatpush1.msra.mxu0 0.0
      %795 = vmatprep.subr.mxu0 0.0
      %796 = vmatpush1.msra.mxu0 0.0
      %797 = vmatprep.subr.mxu0 0.0
      %798 = vmatpush1.msra.mxu0 0.0
      %799 = vmatprep.subr.mxu0 0.0
      %800 = vmatpush1.msra.mxu0 0.0
      %801 = vmatprep.subr.mxu0 0.0
      %802 = vmatpush1.msra.mxu0 0.0
      %803 = vmatprep.subr.mxu0 0.0
      %804 = vmatpush1.msra.mxu0 0.0
      %805 = vmatprep.subr.mxu0 0.0
      %806 = vmatpush1.msra.mxu0 0.0
      %807 = vmatprep.subr.mxu0 0.0
      %808 = vmatpush1.msra.mxu0 0.0
      %809 = vmatprep.subr.mxu0 0.0
      %810 = vmatpush1.msra.mxu0 0.0
      %811 = vmatprep.subr.mxu0 0.0
      %812 = vmatpush1.msra.mxu0 0.0
      %813 = vmatprep.subr.mxu0 0.0
      %814 = vmatpush1.msra.mxu0 0.0
      %815 = vmatprep.subr.mxu0 0.0
      %816 = vmatpush1.msra.mxu0 0.0
      %817 = vmatprep.mubr.f32.mxu0 0.0
      %818 = vmatmul.mubr.f32.gmra.mrb[0].mxu0 %v748
      %v819 = vpop.f32.mrb[0].mxu0
      %v820 = vadd.f32 0.0, %v819
      %v821 = vpop.f32.mrb[0].mxu0
      %822 = vmatprep.mubr.f32.mxu0 0.0
      %823 = vmatmul.mubr.f32.gmra.mrb[0].mxu0 %v751
      %v824 = vpop.f32.mrb[0].mxu0
      %v825 = vadd.f32 0.0, %v824
      %v826 = vpop.f32.mrb[0].mxu0
      %827 = vdwg.mxu0
      %v828 = vadd.f32 %v734, %v820
      %v829 = vadd.f32 %v735, %v825
      %v830 = vxor.u32 %v828, 2147483648
      %v831 = vxor.u32 %v829, 2147483648
      %v832 = vmul.f32 %v830, 1.442695
      %v833 = vpow.pop %v832
      %v834 = vmul.f32 %v831, 1.442695
      %v835 = vpow.pop %v834
      %v836 = vadd.f32 %v833, 1.0
      %v837 = vadd.f32 %v835, 1.0
      %v838 = vrcp.pop %v836
      %v839 = vmul.f32 1.0, %v838
      %v840 = vrcp.pop %v837
      %v841 = vmul.f32 1.0, %v840
      %842 = vst.msk [vmem:[#allocation10] sm:$0xff] %vm56, %v839
      %843 = vst.msk [vmem:[#allocation10 + $0x8] sm:$0xff] %vm56, %v841
      %s844 = scalar_lea.vmem [#allocation4], 32
      %v845 = vld [vmem:[%s844] sm:$0xff]
      %v846 = vld [vmem:[%s844 + $0x8] sm:$0xff]
      %v847 = vld [vmem:[%s844 + $0x10] sm:$0xff]
      %v848 = vld [vmem:[%s844 + $0x18] sm:$0xff]
      %849 = vrot.lane.b32.xlu0 %v845, 3
      %v850 = vpop.permute.xlu0 %849
      %851 = vrot.lane.b32.xlu0 %v846, 3
      %v852 = vpop.permute.xlu0 %851
      %853 = vrot.lane.b32.xlu0 %v847, 3
      %v854 = vpop.permute.xlu0 %853
      %855 = vrot.lane.b32.xlu0 %v848, 3
      %v856 = vpop.permute.xlu0 %855
      %v857 = vld [vmem:[#allocation5] sm:$0xff]
      %v858 = vld [vmem:[#allocation5 + $0x8] sm:$0xff]
      %859 = vrot.lane.b32.xlu0 %v845, 2
      %v860 = vpop.permute.xlu0 %859
      %861 = vrot.lane.b32.xlu0 %v846, 2
      %v862 = vpop.permute.xlu0 %861
      %863 = vrot.lane.b32.xlu0 %v847, 2
      %v864 = vpop.permute.xlu0 %863
      %865 = vrot.lane.b32.xlu0 %v848, 2
      %v866 = vpop.permute.xlu0 %865
      %v867 = vld [vmem:[%s202] sm:$0xff]
      %v868 = vld [vmem:[%s202 + $0x8] sm:$0xff]
      %v870 = vsel %vm205, %v867, 0
      %v873 = vsel %vm205, %v868, 0
      %875 = vmatprep.subr.mxu0 0.0
      %876 = vmatpush1.msra.mxu0 %v860
      %877 = vmatprep.subr.mxu0 0.0
      %878 = vmatpush1.msra.mxu0 %v862
      %879 = vmatprep.subr.mxu0 0.0
      %880 = vmatpush1.msra.mxu0 %v864
      %881 = vmatprep.subr.mxu0 0.0
      %882 = vmatpush1.msra.mxu0 %v866
      %883 = vmatprep.subr.mxu0 0.0
      %884 = vmatpush1.msra.mxu0 0.0
      %885 = vmatprep.subr.mxu0 0.0
      %886 = vmatpush1.msra.mxu0 0.0
      %887 = vmatprep.subr.mxu0 0.0
      %888 = vmatpush1.msra.mxu0 0.0
      %889 = vmatprep.subr.mxu0 0.0
      %890 = vmatpush1.msra.mxu0 0.0
      %891 = vmatprep.subr.mxu0 0.0
      %892 = vmatpush1.msra.mxu0 0.0
      %893 = vmatprep.subr.mxu0 0.0
      %894 = vmatpush1.msra.mxu0 0.0
      %895 = vmatprep.subr.mxu0 0.0
      %896 = vmatpush1.msra.mxu0 0.0
      %897 = vmatprep.subr.mxu0 0.0
      %898 = vmatpush1.msra.mxu0 0.0
      %899 = vmatprep.subr.mxu0 0.0
      %900 = vmatpush1.msra.mxu0 0.0
      %901 = vmatprep.subr.mxu0 0.0
      %902 = vmatpush1.msra.mxu0 0.0
      %903 = vmatprep.subr.mxu0 0.0
      %904 = vmatpush1.msra.mxu0 0.0
      %905 = vmatprep.subr.mxu0 0.0
      %906 = vmatpush1.msra.mxu0 0.0
      %907 = vmatprep.subr.mxu0 0.0
      %908 = vmatpush1.msra.mxu0 0.0
      %909 = vmatprep.subr.mxu0 0.0
      %910 = vmatpush1.msra.mxu0 0.0
      %911 = vmatprep.subr.mxu0 0.0
      %912 = vmatpush1.msra.mxu0 0.0
      %913 = vmatprep.subr.mxu0 0.0
      %914 = vmatpush1.msra.mxu0 0.0
      %915 = vmatprep.subr.mxu0 0.0
      %916 = vmatpush1.msra.mxu0 0.0
      %917 = vmatprep.subr.mxu0 0.0
      %918 = vmatpush1.msra.mxu0 0.0
      %919 = vmatprep.subr.mxu0 0.0
      %920 = vmatpush1.msra.mxu0 0.0
      %921 = vmatprep.subr.mxu0 0.0
      %922 = vmatpush1.msra.mxu0 0.0
      %923 = vmatprep.subr.mxu0 0.0
      %924 = vmatpush1.msra.mxu0 0.0
      %925 = vmatprep.subr.mxu0 0.0
      %926 = vmatpush1.msra.mxu0 0.0
      %927 = vmatprep.subr.mxu0 0.0
      %928 = vmatpush1.msra.mxu0 0.0
      %929 = vmatprep.subr.mxu0 0.0
      %930 = vmatpush1.msra.mxu0 0.0
      %931 = vmatprep.subr.mxu0 0.0
      %932 = vmatpush1.msra.mxu0 0.0
      %933 = vmatprep.subr.mxu0 0.0
      %934 = vmatpush1.msra.mxu0 0.0
      %935 = vmatprep.subr.mxu0 0.0
      %936 = vmatpush1.msra.mxu0 0.0
      %937 = vmatprep.subr.mxu0 0.0
      %938 = vmatpush1.msra.mxu0 0.0
      %939 = vmatprep.mubr.f32.mxu0 0.0
      %940 = vmatmul.mubr.f32.gmra.mrb[0].mxu0 %v870
      %v941 = vpop.f32.mrb[0].mxu0
      %v942 = vadd.f32 0.0, %v941
      %v943 = vpop.f32.mrb[0].mxu0
      %944 = vmatprep.mubr.f32.mxu0 0.0
      %945 = vmatmul.mubr.f32.gmra.mrb[0].mxu0 %v873
      %v946 = vpop.f32.mrb[0].mxu0
      %v947 = vadd.f32 0.0, %v946
      %v948 = vpop.f32.mrb[0].mxu0
      %949 = vdwg.mxu0
      %v951 = vsel %vm205, %v857, 0
      %v954 = vsel %vm205, %v858, 0
      %956 = vmatprep.subr.mxu0 0.0
      %957 = vmatpush1.msra.mxu0 %v850
      %958 = vmatprep.subr.mxu0 0.0
      %959 = vmatpush1.msra.mxu0 %v852
      %960 = vmatprep.subr.mxu0 0.0
      %961 = vmatpush1.msra.mxu0 %v854
      %962 = vmatprep.subr.mxu0 0.0
      %963 = vmatpush1.msra.mxu0 %v856
      %964 = vmatprep.subr.mxu0 0.0
      %965 = vmatpush1.msra.mxu0 0.0
      %966 = vmatprep.subr.mxu0 0.0
      %967 = vmatpush1.msra.mxu0 0.0
      %968 = vmatprep.subr.mxu0 0.0
      %969 = vmatpush1.msra.mxu0 0.0
      %970 = vmatprep.subr.mxu0 0.0
      %971 = vmatpush1.msra.mxu0 0.0
      %972 = vmatprep.subr.mxu0 0.0
      %973 = vmatpush1.msra.mxu0 0.0
      %974 = vmatprep.subr.mxu0 0.0
      %975 = vmatpush1.msra.mxu0 0.0
      %976 = vmatprep.subr.mxu0 0.0
      %977 = vmatpush1.msra.mxu0 0.0
      %978 = vmatprep.subr.mxu0 0.0
      %979 = vmatpush1.msra.mxu0 0.0
      %980 = vmatprep.subr.mxu0 0.0
      %981 = vmatpush1.msra.mxu0 0.0
      %982 = vmatprep.subr.mxu0 0.0
      %983 = vmatpush1.msra.mxu0 0.0
      %984 = vmatprep.subr.mxu0 0.0
      %985 = vmatpush1.msra.mxu0 0.0
      %986 = vmatprep.subr.mxu0 0.0
      %987 = vmatpush1.msra.mxu0 0.0
      %988 = vmatprep.subr.mxu0 0.0
      %989 = vmatpush1.msra.mxu0 0.0
      %990 = vmatprep.subr.mxu0 0.0
      %991 = vmatpush1.msra.mxu0 0.0
      %992 = vmatprep.subr.mxu0 0.0
      %993 = vmatpush1.msra.mxu0 0.0
      %994 = vmatprep.subr.mxu0 0.0
      %995 = vmatpush1.msra.mxu0 0.0
      %996 = vmatprep.subr.mxu0 0.0
      %997 = vmatpush1.msra.mxu0 0.0
      %998 = vmatprep.subr.mxu0 0.0
      %999 = vmatpush1.msra.mxu0 0.0
      %1000 = vmatprep.subr.mxu0 0.0
      %1001 = vmatpush1.msra.mxu0 0.0
      %1002 = vmatprep.subr.mxu0 0.0
      %1003 = vmatpush1.msra.mxu0 0.0
      %1004 = vmatprep.subr.mxu0 0.0
      %1005 = vmatpush1.msra.mxu0 0.0
      %1006 = vmatprep.subr.mxu0 0.0
      %1007 = vmatpush1.msra.mxu0 0.0
      %1008 = vmatprep.subr.mxu0 0.0
      %1009 = vmatpush1.msra.mxu0 0.0
      %1010 = vmatprep.subr.mxu0 0.0
      %1011 = vmatpush1.msra.mxu0 0.0
      %1012 = vmatprep.subr.mxu0 0.0
      %1013 = vmatpush1.msra.mxu0 0.0
      %1014 = vmatprep.subr.mxu0 0.0
      %1015 = vmatpush1.msra.mxu0 0.0
      %1016 = vmatprep.subr.mxu0 0.0
      %1017 = vmatpush1.msra.mxu0 0.0
      %1018 = vmatprep.subr.mxu0 0.0
      %1019 = vmatpush1.msra.mxu0 0.0
      %1020 = vmatprep.mubr.f32.mxu0 0.0
      %1021 = vmatmul.mubr.f32.gmra.mrb[0].mxu0 %v951
      %v1022 = vpop.f32.mrb[0].mxu0
      %v1023 = vadd.f32 %v942, %v1022
      %v1024 = vpop.f32.mrb[0].mxu0
      %1025 = vmatprep.mubr.f32.mxu0 0.0
      %1026 = vmatmul.mubr.f32.gmra.mrb[0].mxu0 %v954
      %v1027 = vpop.f32.mrb[0].mxu0
      %v1028 = vadd.f32 %v947, %v1027
      %v1029 = vpop.f32.mrb[0].mxu0
      %1030 = vdwg.mxu0
      %1031 = vrot.lane.b32.xlu0 %v845, 1
      %v1032 = vpop.permute.xlu0 %1031
      %1033 = vrot.lane.b32.xlu0 %v846, 1
      %v1034 = vpop.permute.xlu0 %1033
      %1035 = vrot.lane.b32.xlu0 %v847, 1
      %v1036 = vpop.permute.xlu0 %1035
      %1037 = vrot.lane.b32.xlu0 %v848, 1
      %v1038 = vpop.permute.xlu0 %1037
      %v1039 = vld [vmem:[%s376] sm:$0xff]
      %v1040 = vld [vmem:[%s376 + $0x8] sm:$0xff]
      %v1042 = vsel %vm205, %v1039, 0
      %v1045 = vsel %vm205, %v1040, 0
      %1047 = vmatprep.subr.mxu0 0.0
      %1048 = vmatpush1.msra.mxu0 %v1032
      %1049 = vmatprep.subr.mxu0 0.0
      %1050 = vmatpush1.msra.mxu0 %v1034
      %1051 = vmatprep.subr.mxu0 0.0
      %1052 = vmatpush1.msra.mxu0 %v1036
      %1053 = vmatprep.subr.mxu0 0.0
      %1054 = vmatpush1.msra.mxu0 %v1038
      %1055 = vmatprep.subr.mxu0 0.0
      %1056 = vmatpush1.msra.mxu0 0.0
      %1057 = vmatprep.subr.mxu0 0.0
      %1058 = vmatpush1.msra.mxu0 0.0
      %1059 = vmatprep.subr.mxu0 0.0
      %1060 = vmatpush1.msra.mxu0 0.0
      %1061 = vmatprep.subr.mxu0 0.0
      %1062 = vmatpush1.msra.mxu0 0.0
      %1063 = vmatprep.subr.mxu0 0.0
      %1064 = vmatpush1.msra.mxu0 0.0
      %1065 = vmatprep.subr.mxu0 0.0
      %1066 = vmatpush1.msra.mxu0 0.0
      %1067 = vmatprep.subr.mxu0 0.0
      %1068 = vmatpush1.msra.mxu0 0.0
      %1069 = vmatprep.subr.mxu0 0.0
      %1070 = vmatpush1.msra.mxu0 0.0
      %1071 = vmatprep.subr.mxu0 0.0
      %1072 = vmatpush1.msra.mxu0 0.0
      %1073 = vmatprep.subr.mxu0 0.0
      %1074 = vmatpush1.msra.mxu0 0.0
      %1075 = vmatprep.subr.mxu0 0.0
      %1076 = vmatpush1.msra.mxu0 0.0
      %1077 = vmatprep.subr.mxu0 0.0
      %1078 = vmatpush1.msra.mxu0 0.0
      %1079 = vmatprep.subr.mxu0 0.0
      %1080 = vmatpush1.msra.mxu0 0.0
      %1081 = vmatprep.subr.mxu0 0.0
      %1082 = vmatpush1.msra.mxu0 0.0
      %1083 = vmatprep.subr.mxu0 0.0
      %1084 = vmatpush1.msra.mxu0 0.0
      %1085 = vmatprep.subr.mxu0 0.0
      %1086 = vmatpush1.msra.mxu0 0.0
      %1087 = vmatprep.subr.mxu0 0.0
      %1088 = vmatpush1.msra.mxu0 0.0
      %1089 = vmatprep.subr.mxu0 0.0
      %1090 = vmatpush1.msra.mxu0 0.0
      %1091 = vmatprep.subr.mxu0 0.0
      %1092 = vmatpush1.msra.mxu0 0.0
      %1093 = vmatprep.subr.mxu0 0.0
      %1094 = vmatpush1.msra.mxu0 0.0
      %1095 = vmatprep.subr.mxu0 0.0
      %1096 = vmatpush1.msra.mxu0 0.0
      %1097 = vmatprep.subr.mxu0 0.0
      %1098 = vmatpush1.msra.mxu0 0.0
      %1099 = vmatprep.subr.mxu0 0.0
      %1100 = vmatpush1.msra.mxu0 0.0
      %1101 = vmatprep.subr.mxu0 0.0
      %1102 = vmatpush1.msra.mxu0 0.0
      %1103 = vmatprep.subr.mxu0 0.0
      %1104 = vmatpush1.msra.mxu0 0.0
      %1105 = vmatprep.subr.mxu0 0.0
      %1106 = vmatpush1.msra.mxu0 0.0
      %1107 = vmatprep.subr.mxu0 0.0
      %1108 = vmatpush1.msra.mxu0 0.0
      %1109 = vmatprep.subr.mxu0 0.0
      %1110 = vmatpush1.msra.mxu0 0.0
      %1111 = vmatprep.mubr.f32.mxu0 0.0
      %1112 = vmatmul.mubr.f32.gmra.mrb[0].mxu0 %v1042
      %v1113 = vpop.f32.mrb[0].mxu0
      %v1114 = vadd.f32 0.0, %v1113
      %v1115 = vpop.f32.mrb[0].mxu0
      %1116 = vmatprep.mubr.f32.mxu0 0.0
      %1117 = vmatmul.mubr.f32.gmra.mrb[0].mxu0 %v1045
      %v1118 = vpop.f32.mrb[0].mxu0
      %v1119 = vadd.f32 0.0, %v1118
      %v1120 = vpop.f32.mrb[0].mxu0
      %1121 = vdwg.mxu0
      %v1122 = vadd.f32 %v1023, %v1114
      %v1123 = vadd.f32 %v1028, %v1119
      %v1124 = vld [vmem:[%s462] sm:$0xff]
      %v1125 = vld [vmem:[%s462 + $0x8] sm:$0xff]
      %v1127 = vsel %vm205, %v1124, 0
      %v1130 = vsel %vm205, %v1125, 0
      %1132 = vmatprep.subr.mxu0 0.0
      %1133 = vmatpush1.msra.mxu0 %v845
      %1134 = vmatprep.subr.mxu0 0.0
      %1135 = vmatpush1.msra.mxu0 %v846
      %1136 = vmatprep.subr.mxu0 0.0
      %1137 = vmatpush1.msra.mxu0 %v847
      %1138 = vmatprep.subr.mxu0 0.0
      %1139 = vmatpush1.msra.mxu0 %v848
      %1140 = vmatprep.subr.mxu0 0.0
      %1141 = vmatpush1.msra.mxu0 0.0
      %1142 = vmatprep.subr.mxu0 0.0
      %1143 = vmatpush1.msra.mxu0 0.0
      %1144 = vmatprep.subr.mxu0 0.0
      %1145 = vmatpush1.msra.mxu0 0.0
      %1146 = vmatprep.subr.mxu0 0.0
      %1147 = vmatpush1.msra.mxu0 0.0
      %1148 = vmatprep.subr.mxu0 0.0
      %1149 = vmatpush1.msra.mxu0 0.0
      %1150 = vmatprep.subr.mxu0 0.0
      %1151 = vmatpush1.msra.mxu0 0.0
      %1152 = vmatprep.subr.mxu0 0.0
      %1153 = vmatpush1.msra.mxu0 0.0
      %1154 = vmatprep.subr.mxu0 0.0
      %1155 = vmatpush1.msra.mxu0 0.0
      %1156 = vmatprep.subr.mxu0 0.0
      %1157 = vmatpush1.msra.mxu0 0.0
      %1158 = vmatprep.subr.mxu0 0.0
      %1159 = vmatpush1.msra.mxu0 0.0
      %1160 = vmatprep.subr.mxu0 0.0
      %1161 = vmatpush1.msra.mxu0 0.0
      %1162 = vmatprep.subr.mxu0 0.0
      %1163 = vmatpush1.msra.mxu0 0.0
      %1164 = vmatprep.subr.mxu0 0.0
      %1165 = vmatpush1.msra.mxu0 0.0
      %1166 = vmatprep.subr.mxu0 0.0
      %1167 = vmatpush1.msra.mxu0 0.0
      %1168 = vmatprep.subr.mxu0 0.0
      %1169 = vmatpush1.msra.mxu0 0.0
      %1170 = vmatprep.subr.mxu0 0.0
      %1171 = vmatpush1.msra.mxu0 0.0
      %1172 = vmatprep.subr.mxu0 0.0
      %1173 = vmatpush1.msra.mxu0 0.0
      %1174 = vmatprep.subr.mxu0 0.0
      %1175 = vmatpush1.msra.mxu0 0.0
      %1176 = vmatprep.subr.mxu0 0.0
      %1177 = vmatpush1.msra.mxu0 0.0
      %1178 = vmatprep.subr.mxu0 0.0
      %1179 = vmatpush1.msra.mxu0 0.0
      %1180 = vmatprep.subr.mxu0 0.0
      %1181 = vmatpush1.msra.mxu0 0.0
      %1182 = vmatprep.subr.mxu0 0.0
      %1183 = vmatpush1.msra.mxu0 0.0
      %1184 = vmatprep.subr.mxu0 0.0
      %1185 = vmatpush1.msra.mxu0 0.0
      %1186 = vmatprep.subr.mxu0 0.0
      %1187 = vmatpush1.msra.mxu0 0.0
      %1188 = vmatprep.subr.mxu0 0.0
      %1189 = vmatpush1.msra.mxu0 0.0
      %1190 = vmatprep.subr.mxu0 0.0
      %1191 = vmatpush1.msra.mxu0 0.0
      %1192 = vmatprep.subr.mxu0 0.0
      %1193 = vmatpush1.msra.mxu0 0.0
      %1194 = vmatprep.subr.mxu0 0.0
      %1195 = vmatpush1.msra.mxu0 0.0
      %1196 = vmatprep.mubr.f32.mxu0 0.0
      %1197 = vmatmul.mubr.f32.gmra.mrb[0].mxu0 %v1127
      %v1198 = vpop.f32.mrb[0].mxu0
      %v1199 = vadd.f32 0.0, %v1198
      %v1200 = vpop.f32.mrb[0].mxu0
      %1201 = vmatprep.mubr.f32.mxu0 0.0
      %1202 = vmatmul.mubr.f32.gmra.mrb[0].mxu0 %v1130
      %v1203 = vpop.f32.mrb[0].mxu0
      %v1204 = vadd.f32 0.0, %v1203
      %v1205 = vpop.f32.mrb[0].mxu0
      %1206 = vdwg.mxu0
      %v1207 = vadd.f32 %v1122, %v1199
      %v1208 = vadd.f32 %v1123, %v1204
      %1209 = vrot.lane.b32.xlu0 %v845, 127
      %v1210 = vpop.permute.xlu0 %1209
      %1211 = vrot.lane.b32.xlu0 %v846, 127
      %v1212 = vpop.permute.xlu0 %1211
      %1213 = vrot.lane.b32.xlu0 %v847, 127
      %v1214 = vpop.permute.xlu0 %1213
      %1215 = vrot.lane.b32.xlu0 %v848, 127
      %v1216 = vpop.permute.xlu0 %1215
      %v1217 = vld [vmem:[%s556] sm:$0xff]
      %v1218 = vld [vmem:[%s556 + $0x8] sm:$0xff]
      %v1220 = vsel %vm205, %v1217, 0
      %v1223 = vsel %vm205, %v1218, 0
      %1225 = vmatprep.subr.mxu0 0.0
      %1226 = vmatpush1.msra.mxu0 %v1210
      %1227 = vmatprep.subr.mxu0 0.0
      %1228 = vmatpush1.msra.mxu0 %v1212
      %1229 = vmatprep.subr.mxu0 0.0
      %1230 = vmatpush1.msra.mxu0 %v1214
      %1231 = vmatprep.subr.mxu0 0.0
      %1232 = vmatpush1.msra.mxu0 %v1216
      %1233 = vmatprep.subr.mxu0 0.0
      %1234 = vmatpush1.msra.mxu0 0.0
      %1235 = vmatprep.subr.mxu0 0.0
      %1236 = vmatpush1.msra.mxu0 0.0
      %1237 = vmatprep.subr.mxu0 0.0
      %1238 = vmatpush1.msra.mxu0 0.0
      %1239 = vmatprep.subr.mxu0 0.0
      %1240 = vmatpush1.msra.mxu0 0.0
      %1241 = vmatprep.subr.mxu0 0.0
      %1242 = vmatpush1.msra.mxu0 0.0
      %1243 = vmatprep.subr.mxu0 0.0
      %1244 = vmatpush1.msra.mxu0 0.0
      %1245 = vmatprep.subr.mxu0 0.0
      %1246 = vmatpush1.msra.mxu0 0.0
      %1247 = vmatprep.subr.mxu0 0.0
      %1248 = vmatpush1.msra.mxu0 0.0
      %1249 = vmatprep.subr.mxu0 0.0
      %1250 = vmatpush1.msra.mxu0 0.0
      %1251 = vmatprep.subr.mxu0 0.0
      %1252 = vmatpush1.msra.mxu0 0.0
      %1253 = vmatprep.subr.mxu0 0.0
      %1254 = vmatpush1.msra.mxu0 0.0
      %1255 = vmatprep.subr.mxu0 0.0
      %1256 = vmatpush1.msra.mxu0 0.0
      %1257 = vmatprep.subr.mxu0 0.0
      %1258 = vmatpush1.msra.mxu0 0.0
      %1259 = vmatprep.subr.mxu0 0.0
      %1260 = vmatpush1.msra.mxu0 0.0
      %1261 = vmatprep.subr.mxu0 0.0
      %1262 = vmatpush1.msra.mxu0 0.0
      %1263 = vmatprep.subr.mxu0 0.0
      %1264 = vmatpush1.msra.mxu0 0.0
      %1265 = vmatprep.subr.mxu0 0.0
      %1266 = vmatpush1.msra.mxu0 0.0
      %1267 = vmatprep.subr.mxu0 0.0
      %1268 = vmatpush1.msra.mxu0 0.0
      %1269 = vmatprep.subr.mxu0 0.0
      %1270 = vmatpush1.msra.mxu0 0.0
      %1271 = vmatprep.subr.mxu0 0.0
      %1272 = vmatpush1.msra.mxu0 0.0
      %1273 = vmatprep.subr.mxu0 0.0
      %1274 = vmatpush1.msra.mxu0 0.0
      %1275 = vmatprep.subr.mxu0 0.0
      %1276 = vmatpush1.msra.mxu0 0.0
      %1277 = vmatprep.subr.mxu0 0.0
      %1278 = vmatpush1.msra.mxu0 0.0
      %1279 = vmatprep.subr.mxu0 0.0
      %1280 = vmatpush1.msra.mxu0 0.0
      %1281 = vmatprep.subr.mxu0 0.0
      %1282 = vmatpush1.msra.mxu0 0.0
      %1283 = vmatprep.subr.mxu0 0.0
      %1284 = vmatpush1.msra.mxu0 0.0
      %1285 = vmatprep.subr.mxu0 0.0
      %1286 = vmatpush1.msra.mxu0 0.0
      %1287 = vmatprep.subr.mxu0 0.0
      %1288 = vmatpush1.msra.mxu0 0.0
      %1289 = vmatprep.mubr.f32.mxu0 0.0
      %1290 = vmatmul.mubr.f32.gmra.mrb[0].mxu0 %v1220
      %v1291 = vpop.f32.mrb[0].mxu0
      %v1292 = vadd.f32 0.0, %v1291
      %v1293 = vpop.f32.mrb[0].mxu0
      %1294 = vmatprep.mubr.f32.mxu0 0.0
      %1295 = vmatmul.mubr.f32.gmra.mrb[0].mxu0 %v1223
      %v1296 = vpop.f32.mrb[0].mxu0
      %v1297 = vadd.f32 0.0, %v1296
      %v1298 = vpop.f32.mrb[0].mxu0
      %1299 = vdwg.mxu0
      %v1300 = vadd.f32 %v1207, %v1292
      %v1301 = vadd.f32 %v1208, %v1297
      %1302 = vrot.lane.b32.xlu0 %v845, 126
      %v1303 = vpop.permute.xlu0 %1302
      %1304 = vrot.lane.b32.xlu0 %v846, 126
      %v1305 = vpop.permute.xlu0 %1304
      %1306 = vrot.lane.b32.xlu0 %v847, 126
      %v1307 = vpop.permute.xlu0 %1306
      %1308 = vrot.lane.b32.xlu0 %v848, 126
      %v1309 = vpop.permute.xlu0 %1308
      %v1310 = vld [vmem:[%s650] sm:$0xff]
      %v1311 = vld [vmem:[%s650 + $0x8] sm:$0xff]
      %v1313 = vsel %vm205, %v1310, 0
      %v1316 = vsel %vm205, %v1311, 0
      %1318 = vmatprep.subr.mxu0 0.0
      %1319 = vmatpush1.msra.mxu0 %v1303
      %1320 = vmatprep.subr.mxu0 0.0
      %1321 = vmatpush1.msra.mxu0 %v1305
      %1322 = vmatprep.subr.mxu0 0.0
      %1323 = vmatpush1.msra.mxu0 %v1307
      %1324 = vmatprep.subr.mxu0 0.0
      %1325 = vmatpush1.msra.mxu0 %v1309
      %1326 = vmatprep.subr.mxu0 0.0
      %1327 = vmatpush1.msra.mxu0 0.0
      %1328 = vmatprep.subr.mxu0 0.0
      %1329 = vmatpush1.msra.mxu0 0.0
      %1330 = vmatprep.subr.mxu0 0.0
      %1331 = vmatpush1.msra.mxu0 0.0
      %1332 = vmatprep.subr.mxu0 0.0
      %1333 = vmatpush1.msra.mxu0 0.0
      %1334 = vmatprep.subr.mxu0 0.0
      %1335 = vmatpush1.msra.mxu0 0.0
      %1336 = vmatprep.subr.mxu0 0.0
      %1337 = vmatpush1.msra.mxu0 0.0
      %1338 = vmatprep.subr.mxu0 0.0
      %1339 = vmatpush1.msra.mxu0 0.0
      %1340 = vmatprep.subr.mxu0 0.0
      %1341 = vmatpush1.msra.mxu0 0.0
      %1342 = vmatprep.subr.mxu0 0.0
      %1343 = vmatpush1.msra.mxu0 0.0
      %1344 = vmatprep.subr.mxu0 0.0
      %1345 = vmatpush1.msra.mxu0 0.0
      %1346 = vmatprep.subr.mxu0 0.0
      %1347 = vmatpush1.msra.mxu0 0.0
      %1348 = vmatprep.subr.mxu0 0.0
      %1349 = vmatpush1.msra.mxu0 0.0
      %1350 = vmatprep.subr.mxu0 0.0
      %1351 = vmatpush1.msra.mxu0 0.0
      %1352 = vmatprep.subr.mxu0 0.0
      %1353 = vmatpush1.msra.mxu0 0.0
      %1354 = vmatprep.subr.mxu0 0.0
      %1355 = vmatpush1.msra.mxu0 0.0
      %1356 = vmatprep.subr.mxu0 0.0
      %1357 = vmatpush1.msra.mxu0 0.0
      %1358 = vmatprep.subr.mxu0 0.0
      %1359 = vmatpush1.msra.mxu0 0.0
      %1360 = vmatprep.subr.mxu0 0.0
      %1361 = vmatpush1.msra.mxu0 0.0
      %1362 = vmatprep.subr.mxu0 0.0
      %1363 = vmatpush1.msra.mxu0 0.0
      %1364 = vmatprep.subr.mxu0 0.0
      %1365 = vmatpush1.msra.mxu0 0.0
      %1366 = vmatprep.subr.mxu0 0.0
      %1367 = vmatpush1.msra.mxu0 0.0
      %1368 = vmatprep.subr.mxu0 0.0
      %1369 = vmatpush1.msra.mxu0 0.0
      %1370 = vmatprep.subr.mxu0 0.0
      %1371 = vmatpush1.msra.mxu0 0.0
      %1372 = vmatprep.subr.mxu0 0.0
      %1373 = vmatpush1.msra.mxu0 0.0
      %1374 = vmatprep.subr.mxu0 0.0
      %1375 = vmatpush1.msra.mxu0 0.0
      %1376 = vmatprep.subr.mxu0 0.0
      %1377 = vmatpush1.msra.mxu0 0.0
      %1378 = vmatprep.subr.mxu0 0.0
      %1379 = vmatpush1.msra.mxu0 0.0
      %1380 = vmatprep.subr.mxu0 0.0
      %1381 = vmatpush1.msra.mxu0 0.0
      %1382 = vmatprep.mubr.f32.mxu0 0.0
      %1383 = vmatmul.mubr.f32.gmra.mrb[0].mxu0 %v1313
      %v1384 = vpop.f32.mrb[0].mxu0
      %v1385 = vadd.f32 0.0, %v1384
      %v1386 = vpop.f32.mrb[0].mxu0
      %1387 = vmatprep.mubr.f32.mxu0 0.0
      %1388 = vmatmul.mubr.f32.gmra.mrb[0].mxu0 %v1316
      %v1389 = vpop.f32.mrb[0].mxu0
      %v1390 = vadd.f32 0.0, %v1389
      %v1391 = vpop.f32.mrb[0].mxu0
      %1392 = vdwg.mxu0
      %v1393 = vadd.f32 %v1300, %v1385
      %v1394 = vadd.f32 %v1301, %v1390
      %1395 = vrot.lane.b32.xlu0 %v845, 125
      %v1396 = vpop.permute.xlu0 %1395
      %1397 = vrot.lane.b32.xlu0 %v846, 125
      %v1398 = vpop.permute.xlu0 %1397
      %1399 = vrot.lane.b32.xlu0 %v847, 125
      %v1400 = vpop.permute.xlu0 %1399
      %1401 = vrot.lane.b32.xlu0 %v848, 125
      %v1402 = vpop.permute.xlu0 %1401
      %v1403 = vld [vmem:[%s744] sm:$0xff]
      %v1404 = vld [vmem:[%s744 + $0x8] sm:$0xff]
      %v1406 = vsel %vm205, %v1403, 0
      %v1409 = vsel %vm205, %v1404, 0
      %1411 = vmatprep.subr.mxu0 0.0
      %1412 = vmatpush1.msra.mxu0 %v1396
      %1413 = vmatprep.subr.mxu0 0.0
      %1414 = vmatpush1.msra.mxu0 %v1398
      %1415 = vmatprep.subr.mxu0 0.0
      %1416 = vmatpush1.msra.mxu0 %v1400
      %1417 = vmatprep.subr.mxu0 0.0
      %1418 = vmatpush1.msra.mxu0 %v1402
      %1419 = vmatprep.subr.mxu0 0.0
      %1420 = vmatpush1.msra.mxu0 0.0
      %1421 = vmatprep.subr.mxu0 0.0
      %1422 = vmatpush1.msra.mxu0 0.0
      %1423 = vmatprep.subr.mxu0 0.0
      %1424 = vmatpush1.msra.mxu0 0.0
      %1425 = vmatprep.subr.mxu0 0.0
      %1426 = vmatpush1.msra.mxu0 0.0
      %1427 = vmatprep.subr.mxu0 0.0
      %1428 = vmatpush1.msra.mxu0 0.0
      %1429 = vmatprep.subr.mxu0 0.0
      %1430 = vmatpush1.msra.mxu0 0.0
      %1431 = vmatprep.subr.mxu0 0.0
      %1432 = vmatpush1.msra.mxu0 0.0
      %1433 = vmatprep.subr.mxu0 0.0
      %1434 = vmatpush1.msra.mxu0 0.0
      %1435 = vmatprep.subr.mxu0 0.0
      %1436 = vmatpush1.msra.mxu0 0.0
      %1437 = vmatprep.subr.mxu0 0.0
      %1438 = vmatpush1.msra.mxu0 0.0
      %1439 = vmatprep.subr.mxu0 0.0
      %1440 = vmatpush1.msra.mxu0 0.0
      %1441 = vmatprep.subr.mxu0 0.0
      %1442 = vmatpush1.msra.mxu0 0.0
      %1443 = vmatprep.subr.mxu0 0.0
      %1444 = vmatpush1.msra.mxu0 0.0
      %1445 = vmatprep.subr.mxu0 0.0
      %1446 = vmatpush1.msra.mxu0 0.0
      %1447 = vmatprep.subr.mxu0 0.0
      %1448 = vmatpush1.msra.mxu0 0.0
      %1449 = vmatprep.subr.mxu0 0.0
      %1450 = vmatpush1.msra.mxu0 0.0
      %1451 = vmatprep.subr.mxu0 0.0
      %1452 = vmatpush1.msra.mxu0 0.0
      %1453 = vmatprep.subr.mxu0 0.0
      %1454 = vmatpush1.msra.mxu0 0.0
      %1455 = vmatprep.subr.mxu0 0.0
      %1456 = vmatpush1.msra.mxu0 0.0
      %1457 = vmatprep.subr.mxu0 0.0
      %1458 = vmatpush1.msra.mxu0 0.0
      %1459 = vmatprep.subr.mxu0 0.0
      %1460 = vmatpush1.msra.mxu0 0.0
      %1461 = vmatprep.subr.mxu0 0.0
      %1462 = vmatpush1.msra.mxu0 0.0
      %1463 = vmatprep.subr.mxu0 0.0
      %1464 = vmatpush1.msra.mxu0 0.0
      %1465 = vmatprep.subr.mxu0 0.0
      %1466 = vmatpush1.msra.mxu0 0.0
      %1467 = vmatprep.subr.mxu0 0.0
      %1468 = vmatpush1.msra.mxu0 0.0
      %1469 = vmatprep.subr.mxu0 0.0
      %1470 = vmatpush1.msra.mxu0 0.0
      %1471 = vmatprep.subr.mxu0 0.0
      %1472 = vmatpush1.msra.mxu0 0.0
      %1473 = vmatprep.subr.mxu0 0.0
      %1474 = vmatpush1.msra.mxu0 0.0
      %1475 = vmatprep.mubr.f32.mxu0 0.0
      %1476 = vmatmul.mubr.f32.gmra.mrb[0].mxu0 %v1406
      %v1477 = vpop.f32.mrb[0].mxu0
      %v1478 = vadd.f32 0.0, %v1477
      %v1479 = vpop.f32.mrb[0].mxu0
      %1480 = vmatprep.mubr.f32.mxu0 0.0
      %1481 = vmatmul.mubr.f32.gmra.mrb[0].mxu0 %v1409
      %v1482 = vpop.f32.mrb[0].mxu0
      %v1483 = vadd.f32 0.0, %v1482
      %v1484 = vpop.f32.mrb[0].mxu0
      %1485 = vdwg.mxu0
      %v1486 = vadd.f32 %v1393, %v1478
      %v1487 = vadd.f32 %v1394, %v1483
      %v1488 = vxor.u32 %v1486, 2147483648
      %v1489 = vxor.u32 %v1487, 2147483648
      %v1490 = vmul.f32 %v1488, 1.442695
      %v1491 = vpow.pop %v1490
      %v1492 = vmul.f32 %v1489, 1.442695
      %v1493 = vpow.pop %v1492
      %v1494 = vadd.f32 %v1491, 1.0
      %v1495 = vadd.f32 %v1493, 1.0
      %v1496 = vrcp.pop %v1494
      %v1497 = vmul.f32 1.0, %v1496
      %v1498 = vrcp.pop %v1495
      %v1499 = vmul.f32 1.0, %v1498
      %s1500 = scalar_lea.vmem [#allocation10], 16
      %1501 = vst.msk [vmem:[%s1500] sm:$0xff] %vm56, %v1497
      %1502 = vst.msk [vmem:[%s1500 + $0x8] sm:$0xff] %vm56, %v1499
    $region29: #{tpu_custom_call.1} parent=1 // pred_fallthru
      _
    // Predicated region
    $region30: #{tpu_custom_call.1} parent=1 // pred_check
      _
    $region31: #{tpu_custom_call.1} parent=1 // pred_check_branch
      %1504 = sbr.rel (0) target = $region33
    $region32: #{tpu_custom_call.1} parent=1 // pred_region
      %s1506 = ssub.s32 512, 512
      %1507 = vsyncadd [#allocation7], %s1506
      %s1508 = sshll.u32 [#allocation10], 4
      %s1509 = int_to_ptr.vmem [resolvable:$true] %s1508
      %1514 = dma.vmem_to_hbm [thread:$0]  %s1509, 512, %s2, [#allocation7], 128, 128, 8
    $region33: #{tpu_custom_call.1} parent=1 // pred_fallthru
      _
    // Predicated region
    $region34: #{tpu_custom_call.1} parent=1 // pred_check
      _
    $region35: #{tpu_custom_call.1} parent=1 // pred_check_branch
      %1516 = sbr.rel (0) target = $region37
    $region36: #{tpu_custom_call.1} parent=1 // pred_region
      %1517 = dma.done [#allocation7], 512
    $region37: #{tpu_custom_call.1} parent=1 // pred_fallthru
      _
    %1518 = vsyncpa [#allocation6], 1
    %1519 = vsyncpa [#allocation9], 1
    %1520 = vsyncpa [#allocation7], 1

</llo_original>
